<compile_context>
chip_gen: v7x
topology: tpu7x:2x2x1
jax: 0.10.0
libtpu: 0.0.40
codegen_flags: <defaults>
</compile_context>

<pallas_src>
import functools

import jax
import jax.numpy as jnp
from jax import lax
from jax.experimental import pallas as pl
from jax.experimental.pallas import tpu as pltpu


S_PAD = 128  # lane-dense padded width of the decoder output


def _rup(x, m):
    return ((x + m - 1) // m) * m


def _hiro_kernel(nwarmup, B, T, D, E, L, EPAD, mm_dtype,
                 x_ref,      # (B*T, D)        mm   batch-major rows, raw layout
                 wx_ref,     # (D, NX)         mm   ew1 at cols[0:E], bw at cols[EPAD:EPAD+L]
                 wenc_ref,   # (E, EPAD+L)     mm   ew2 at cols[0:E], ew3 at cols[EPAD:]
                 dw1_ref,    # (L, E)          mm
                 wdec_ref,   # (E, EPAD+S_PAD) mm   dw2 at cols[0:E], dw3 at cols[EPAD:]
                 vecs_ref,   # (9, VW)         f32  all bias / affine / diag vectors
                 out_ref):   # (T*B, S_PAD)    f32  time-major, lane-dense
    f32 = jnp.float32
    M = B * T

    # ---- bias / affine vectors: one load, static in-vreg slices ------------
    vecs = vecs_ref[...]
    eb1 = vecs[0:1, :E]
    eb2 = vecs[1:2, :E]
    eb3 = vecs[2:3, :L]
    gamma = vecs[3:4, :L]
    beta = vecs[4:5, :L]
    adiag = vecs[5:6, :L]
    db1 = vecs[6:7, :E]
    db2 = vecs[7:8, :E]
    db3 = vecs[8:9, :S_PAD]

    def mxu(h, w):
        return jnp.dot(h.astype(mm_dtype), w.astype(mm_dtype),
                       preferred_element_type=f32)

    # ---- fused encoder-layer-1 + B matmul over the raw input rows ----------
    # The x_t / u_t1 column selections are folded into zero rows of wx, so
    # the kernel never slices the input lanes; one MXU push produces both the
    # first encoder pre-activation and the bu = u_t1 @ B term.
    x = x_ref[...]
    yx = mxu(x, wx_ref[...])                              # (M, NX) f32
    h = jnp.maximum(yx[:, :E] + eb1, 0.0)
    bu = yx[:, EPAD:EPAD + L]                             # (M, L)  f32

    # ---- remaining encoder layers ------------------------------------------
    wenc = wenc_ref[...]
    h = jnp.maximum(mxu(h, wenc[:, :E]) + eb2, 0.0)
    z = jnp.maximum(mxu(h, wenc[:, EPAD:EPAD + L]) + eb3, 0.0)   # (M, L) f32

    # ---- BatchNorm1d, training-mode biased stats over all B*T rows ---------
    # Single fused axis-0 reduction over [z | z*z] (2L lanes fit one vreg for
    # typical L), then folded to one FMA: z*a + b.
    s = jnp.sum(jnp.concatenate([z, z * z], axis=-1), axis=0, keepdims=True)
    mean = s[:, :L] * (1.0 / M)
    var = jnp.maximum(s[:, L:] * (1.0 / M) - mean * mean, 0.0)
    a = gamma * lax.rsqrt(var + 1e-5)
    b = beta - mean * a
    z = z * a + b

    # ---- sequential latent recurrence, fully unrolled over static T --------
    # Carries stay in vregs; no scratch, no per-step select.  Results are
    # stacked time-major so the decoder sees one contiguous (T*B, L) slab.
    diag = jnp.broadcast_to(jnp.clip(adiag, -0.7, 0.7), (B, L))  # hoisted
    z3 = z.reshape(B, T, L)
    bu3 = bu.reshape(B, T, L)
    carries = []
    carry = z3[:, 0, :]                                   # mirrors torch init
    for t in range(T):
        src = z3[:, t, :] if t <= nwarmup else carry
        carry = src * diag + bu3[:, t, :]
        carries.append(carry)
    z1 = jnp.concatenate(carries, axis=0)                 # (T*B, L) time-major

    # ---- decoder MLP; last layer zero-padded to a lane-dense 128-wide out --
    wdec = wdec_ref[...]
    h = jnp.maximum(mxu(z1, dw1_ref[...]) + db1, 0.0)
    h = jnp.maximum(mxu(h, wdec[:, :E]) + db2, 0.0)
    out_ref[...] = mxu(h, wdec[:, EPAD:]) + db3           # (T*B, S_PAD) f32


def hiro_lran_diag_forward(params, padded_input, nwarmup=0,
                           matmul_dtype=jnp.bfloat16):
    """padded_input: (B, T, input_dim) float32 -> (B, T, output_dim) float32."""
    B, T, D = padded_input.shape
    S = params["state_dim"]
    A = params["act_len"]
    L = params["latent_dim"]
    E = params["ew2"].shape[0]
    f32 = jnp.float32
    mm = matmul_dtype

    EPAD = _rup(E, 128)              # 128-aligned split offset inside fused weights
    NX = _rup(EPAD + L, 256)         # fused [ew1 | bw] width, 256-aligned (v6e/v7x MXU)
    VW = max(E, L, S_PAD)            # width of the bias/affine slab

    # Fused first-stage weight: the x_t / u_t1 lane slices become zero rows,
    # so the kernel consumes the raw (B*T, D) rows with no lane slicing.
    wx = jnp.zeros((D, NX), f32)
    wx = wx.at[:S, :E].set(params["ew1"])
    wx = wx.at[S + A:, EPAD:EPAD + L].set(params["bw"])

    # Grouped encoder / decoder weights (DMA consolidation; blocks 128-aligned).
    wenc = jnp.zeros((E, EPAD + L), f32)
    wenc = wenc.at[:, :E].set(params["ew2"])
    wenc = wenc.at[:, EPAD:].set(params["ew3"])

    wdec = jnp.zeros((E, EPAD + S_PAD), f32)
    wdec = wdec.at[:, :E].set(params["dw2"])
    wdec = wdec.at[:, EPAD:EPAD + S].set(params["dw3"])   # zero-padded to S_PAD lanes

    # All bias / affine / diagonal vectors in one (9, VW) f32 slab.
    vecs = jnp.zeros((9, VW), f32)
    vecs = vecs.at[0, :E].set(params["eb1"][0])
    vecs = vecs.at[1, :E].set(params["eb2"][0])
    vecs = vecs.at[2, :L].set(params["eb3"][0])
    vecs = vecs.at[3, :L].set(params["gamma"][0])
    vecs = vecs.at[4, :L].set(params["beta"][0])
    vecs = vecs.at[5, :L].set(params["adiag"][0])
    vecs = vecs.at[6, :E].set(params["db1"][0])
    vecs = vecs.at[7, :E].set(params["db2"][0])
    vecs = vecs.at[8, :S].set(params["db3"][0])

    x_flat = padded_input.reshape(B * T, D).astype(mm)    # free batch-major flatten

    inputs = (x_flat, wx.astype(mm), wenc.astype(mm),
              params["dw1"].astype(mm), wdec.astype(mm), vecs)

    kernel = functools.partial(_hiro_kernel, nwarmup, B, T, D, E, L, EPAD, mm)
    y_tm = pl.pallas_call(
        kernel,
        out_shape=jax.ShapeDtypeStruct((T * B, S_PAD), f32),
        in_specs=[pl.BlockSpec(memory_space=pltpu.MemorySpace.VMEM)] * len(inputs),
        out_specs=pl.BlockSpec(memory_space=pltpu.MemorySpace.VMEM),
        compiler_params=pltpu.CompilerParams(vmem_limit_bytes=32 * 1024 * 1024),
    )(*inputs)
    # Slice off the lane padding and relayout time-major -> batch-major in
    # XLA, where it fuses with the slice / downstream consumers.
    return jnp.transpose(y_tm.reshape(T, B, S_PAD)[:, :, :S], (1, 0, 2))


def init_params(key, input_dim, output_dim, latent_dim, encoder_dim):
    state_dim = output_dim
    act_len = (input_dim - state_dim) // 2
    ks = jax.random.split(key, 16)

    def lin_w(k, fin, fout):
        return (jax.random.normal(k, (fin, fout), jnp.float32) / jnp.sqrt(fin)).astype(jnp.float32)

    def lin_b(k, fout):
        return (0.1 * jax.random.normal(k, (1, fout), jnp.float32)).astype(jnp.float32)

    params = dict(
        state_dim=state_dim, act_len=act_len, latent_dim=latent_dim,
        # encoder
        ew1=lin_w(ks[0], state_dim, encoder_dim),   eb1=lin_b(ks[1], encoder_dim),
        ew2=lin_w(ks[2], encoder_dim, encoder_dim), eb2=lin_b(ks[3], encoder_dim),
        ew3=lin_w(ks[4], encoder_dim, latent_dim),  eb3=lin_b(ks[5], latent_dim),
        # batch norm affine (randomized to exercise the math)
        gamma=(1.0 + 0.1 * jax.random.normal(ks[6], (1, latent_dim), jnp.float32)),
        beta=(0.1 * jax.random.normal(ks[7], (1, latent_dim), jnp.float32)),
        # DiagonalLinear A: torch init is ones(latent) - 0.8 = 0.2 (clamped in-kernel)
        adiag=jnp.full((1, latent_dim), 0.2, jnp.float32),
        # B: Linear(act_len, latent_dim, bias=False)
        bw=lin_w(ks[8], act_len, latent_dim),
        # decoder
        dw1=lin_w(ks[9], latent_dim, encoder_dim),   db1=lin_b(ks[10], encoder_dim),
        dw2=lin_w(ks[11], encoder_dim, encoder_dim), db2=lin_b(ks[12], encoder_dim),
        dw3=lin_w(ks[13], encoder_dim, state_dim),   db3=lin_b(ks[14], state_dim),
    )
    return params


def reference_forward(params, x, nwarmup=0, matmul_dtype=jnp.float32):
    """Pure-JAX reference of the same forward (for correctness check)."""
    S, A, L = params["state_dim"], params["act_len"], params["latent_dim"]
    B, T, _ = x.shape
    f32 = jnp.float32
    mm = matmul_dtype
    x = x.astype(f32)

    def dot(a, w):
        return jnp.dot(a.astype(mm), w.astype(mm), preferred_element_type=f32)

    x_t = x[:, :, :S]
    u_t1 = x[:, :, S + A:]

    h = jnp.maximum(dot(x_t, params["ew1"]) + params["eb1"], 0.0)
    h = jnp.maximum(dot(h, params["ew2"]) + params["eb2"], 0.0)
    z = jnp.maximum(dot(h, params["ew3"]) + params["eb3"], 0.0)        # (B, T, L)

    zf = z.reshape(B * T, L)
    mean = zf.mean(axis=0)
    var = ((zf - mean) ** 2).mean(axis=0)
    z = (z - mean) / jnp.sqrt(var + 1e-5) * params["gamma"][0] + params["beta"][0]

    diag = jnp.clip(params["adiag"][0], -0.7, 0.7)
    bu = dot(u_t1, params["bw"])                                        # (B, T, L)

    outs = []
    prev = z[:, 0, :]
    for t in range(T):
        inp = z[:, t, :] if t <= nwarmup else prev
        prev = inp * diag + bu[:, t, :]
        outs.append(prev)
    z1 = jnp.stack(outs, axis=1)                                        # (B, T, L)

    h = jnp.maximum(dot(z1, params["dw1"]) + params["db1"], 0.0)
    h = jnp.maximum(dot(h, params["dw2"]) + params["db2"], 0.0)
    return dot(h, params["dw3"]) + params["db3"]                        # (B, T, S)


if __name__ == "__main__":
    # Module hyperparameters: output_dim = state_dim = 8, actuator_length = 4
    # -> input_dim = 16.  B=16, T=8 so the fused row count (B*T=128) actually
    # feeds the MXU instead of leaving the call launch/DMA-latency bound.
    B, T = 16, 8
    input_dim, output_dim, latent_dim, encoder_dim = 16, 8, 16, 32

    key = jax.random.PRNGKey(0)
    kp, kx = jax.random.split(key)
    params = init_params(kp, input_dim, output_dim, latent_dim, encoder_dim)
    padded_input = jax.random.normal(kx, (B, T, input_dim), jnp.float32)

    # Default MXU-native bf16 path and exact-semantics f32 validation path
    # (BatchNorm + recurrence stay f32 in both).
    out_bf16 = hiro_lran_diag_forward(params, padded_input, nwarmup=0)
    out_f32 = hiro_lran_diag_forward(params, padded_input, nwarmup=0,
                                     matmul_dtype=jnp.float32)
    out_bf16, out_f32 = jax.block_until_ready((out_bf16, out_f32))

    ref_f32 = reference_forward(params, padded_input, nwarmup=0,
                                matmul_dtype=jnp.float32)
    ref_bf16 = reference_forward(params, padded_input, nwarmup=0,
                                 matmul_dtype=jnp.bfloat16)

    assert out_f32.shape == (B, T, output_dim), out_f32.shape
    assert jnp.allclose(out_f32, ref_f32, rtol=2e-3, atol=2e-3), \
        float(jnp.max(jnp.abs(out_f32 - ref_f32)))
    # bf16 kernel vs precision-matched reference (tight), and vs f32 reference
    # (loose, bounds the bf16 rounding impact).
    assert jnp.allclose(out_bf16, ref_bf16, rtol=2e-3, atol=2e-3), \
        float(jnp.max(jnp.abs(out_bf16 - ref_bf16)))
    assert jnp.allclose(out_bf16, ref_f32, rtol=1e-1, atol=1e-1), \
        float(jnp.max(jnp.abs(out_bf16 - ref_f32)))

    print("KERNEL_OK")
</pallas_src>

<mosaic_0001>
module attributes {stable_mosaic.version = 11 : i64} {
  func.func @_hiro_kernel(%arg0: memref<128x16xbf16, #tpu.memory_space<vmem>>, %arg1: memref<16x256xbf16, #tpu.memory_space<vmem>>, %arg2: memref<32x144xbf16, #tpu.memory_space<vmem>>, %arg3: memref<16x32xbf16, #tpu.memory_space<vmem>>, %arg4: memref<32x256xbf16, #tpu.memory_space<vmem>>, %arg5: memref<9x128xf32, #tpu.memory_space<vmem>>, %arg6: memref<128x128xf32, #tpu.memory_space<vmem>>) attributes {dimension_semantics = [], scalar_prefetch = 0 : i64, scratch_operands = 0 : i64, tpu.core_type = #tpu.core_type<tc>} {
    %c0 = arith.constant 0 : index
    %c0_0 = arith.constant 0 : index
    %0 = vector.load %arg5[%c0, %c0_0] : memref<9x128xf32, #tpu.memory_space<vmem>>, vector<9x128xf32>
    %1 = vector.extract_strided_slice %0 {offsets = [0, 0], sizes = [1, 32], strides = [1, 1]} : vector<9x128xf32> to vector<1x32xf32>
    %2 = vector.extract_strided_slice %0 {offsets = [1, 0], sizes = [1, 32], strides = [1, 1]} : vector<9x128xf32> to vector<1x32xf32>
    %3 = vector.extract_strided_slice %0 {offsets = [2, 0], sizes = [1, 16], strides = [1, 1]} : vector<9x128xf32> to vector<1x16xf32>
    %4 = vector.extract_strided_slice %0 {offsets = [3, 0], sizes = [1, 16], strides = [1, 1]} : vector<9x128xf32> to vector<1x16xf32>
    %5 = vector.extract_strided_slice %0 {offsets = [4, 0], sizes = [1, 16], strides = [1, 1]} : vector<9x128xf32> to vector<1x16xf32>
    %6 = vector.extract_strided_slice %0 {offsets = [5, 0], sizes = [1, 16], strides = [1, 1]} : vector<9x128xf32> to vector<1x16xf32>
    %7 = vector.extract_strided_slice %0 {offsets = [6, 0], sizes = [1, 32], strides = [1, 1]} : vector<9x128xf32> to vector<1x32xf32>
    %8 = vector.extract_strided_slice %0 {offsets = [7, 0], sizes = [1, 32], strides = [1, 1]} : vector<9x128xf32> to vector<1x32xf32>
    %9 = vector.extract_strided_slice %0 {offsets = [8, 0], sizes = [1, 128], strides = [1, 1]} : vector<9x128xf32> to vector<1x128xf32>
    %c0_1 = arith.constant 0 : index
    %c0_2 = arith.constant 0 : index
    %10 = vector.load %arg0[%c0_1, %c0_2] : memref<128x16xbf16, #tpu.memory_space<vmem>>, vector<128x16xbf16>
    %c0_3 = arith.constant 0 : index
    %c0_4 = arith.constant 0 : index
    %11 = vector.load %arg1[%c0_3, %c0_4] : memref<16x256xbf16, #tpu.memory_space<vmem>>, vector<16x256xbf16>
    %cst = arith.constant dense<0.000000e+00> : vector<128x256xf32>
    %12 = tpu.matmul %10, %11, %cst {dimension_numbers = #tpu.dot_dimension_numbers<[1], [0], [0], [1], [0, 0, 1, 1], [], []>} : vector<128x16xbf16>, vector<16x256xbf16>, vector<128x256xf32> -> vector<128x256xf32>
    %13 = vector.extract_strided_slice %12 {offsets = [0, 0], sizes = [128, 32], strides = [1, 1]} : vector<128x256xf32> to vector<128x32xf32>
    %14 = vector.broadcast %1 : vector<1x32xf32> to vector<128x32xf32>
    %15 = arith.addf %13, %14 : vector<128x32xf32>
    %cst_5 = arith.constant 0.000000e+00 : f32
    %16 = vector.broadcast %cst_5 : f32 to vector<128x32xf32>
    %17 = arith.maximumf %15, %16 : vector<128x32xf32>
    %18 = vector.extract_strided_slice %12 {offsets = [0, 128], sizes = [128, 16], strides = [1, 1]} : vector<128x256xf32> to vector<128x16xf32>
    %c0_6 = arith.constant 0 : index
    %c0_7 = arith.constant 0 : index
    %19 = vector.load %arg2[%c0_6, %c0_7] : memref<32x144xbf16, #tpu.memory_space<vmem>>, vector<32x144xbf16>
    %20 = vector.extract_strided_slice %19 {offsets = [0, 0], sizes = [32, 32], strides = [1, 1]} : vector<32x144xbf16> to vector<32x32xbf16>
    %21 = arith.truncf %17 : vector<128x32xf32> to vector<128x32xbf16>
    %cst_8 = arith.constant dense<0.000000e+00> : vector<128x32xf32>
    %22 = tpu.matmul %21, %20, %cst_8 {dimension_numbers = #tpu.dot_dimension_numbers<[1], [0], [0], [1], [0, 0, 1, 1], [], []>} : vector<128x32xbf16>, vector<32x32xbf16>, vector<128x32xf32> -> vector<128x32xf32>
    %23 = vector.broadcast %2 : vector<1x32xf32> to vector<128x32xf32>
    %24 = arith.addf %22, %23 : vector<128x32xf32>
    %cst_9 = arith.constant 0.000000e+00 : f32
    %25 = vector.broadcast %cst_9 : f32 to vector<128x32xf32>
    %26 = arith.maximumf %24, %25 : vector<128x32xf32>
    %27 = vector.extract_strided_slice %19 {offsets = [0, 128], sizes = [32, 16], strides = [1, 1]} : vector<32x144xbf16> to vector<32x16xbf16>
    %28 = arith.truncf %26 : vector<128x32xf32> to vector<128x32xbf16>
    %cst_10 = arith.constant dense<0.000000e+00> : vector<128x16xf32>
    %29 = tpu.matmul %28, %27, %cst_10 {dimension_numbers = #tpu.dot_dimension_numbers<[1], [0], [0], [1], [0, 0, 1, 1], [], []>} : vector<128x32xbf16>, vector<32x16xbf16>, vector<128x16xf32> -> vector<128x16xf32>
    %30 = vector.broadcast %3 : vector<1x16xf32> to vector<128x16xf32>
    %31 = arith.addf %29, %30 : vector<128x16xf32>
    %cst_11 = arith.constant 0.000000e+00 : f32
    %32 = vector.broadcast %cst_11 : f32 to vector<128x16xf32>
    %33 = arith.maximumf %31, %32 : vector<128x16xf32>
    %34 = arith.mulf %33, %33 : vector<128x16xf32>
    %35 = tpu.concatenate %33, %34 in 1 : vector<128x16xf32>, vector<128x16xf32> -> vector<128x32xf32>
    %cst_12 = arith.constant dense<0.000000e+00> : vector<32xf32>
    %36 = vector.multi_reduction <add>, %35, %cst_12 [0] : vector<128x32xf32> to vector<32xf32>
    %37 = vector.shape_cast %36 : vector<32xf32> to vector<1x32xf32>
    %38 = vector.extract_strided_slice %37 {offsets = [0, 0], sizes = [1, 16], strides = [1, 1]} : vector<1x32xf32> to vector<1x16xf32>
    %cst_13 = arith.constant 7.812500e-03 : f32
    %39 = vector.broadcast %cst_13 : f32 to vector<1x16xf32>
    %40 = arith.mulf %38, %39 : vector<1x16xf32>
    %41 = vector.extract_strided_slice %37 {offsets = [0, 16], sizes = [1, 16], strides = [1, 1]} : vector<1x32xf32> to vector<1x16xf32>
    %cst_14 = arith.constant 7.812500e-03 : f32
    %42 = vector.broadcast %cst_14 : f32 to vector<1x16xf32>
    %43 = arith.mulf %41, %42 : vector<1x16xf32>
    %44 = arith.mulf %40, %40 : vector<1x16xf32>
    %45 = arith.subf %43, %44 : vector<1x16xf32>
    %cst_15 = arith.constant 0.000000e+00 : f32
    %46 = vector.broadcast %cst_15 : f32 to vector<1x16xf32>
    %47 = arith.maximumf %45, %46 : vector<1x16xf32>
    %cst_16 = arith.constant 9.99999974E-6 : f32
    %48 = vector.broadcast %cst_16 : f32 to vector<1x16xf32>
    %49 = arith.addf %47, %48 : vector<1x16xf32>
    %50 = math.rsqrt %49 : vector<1x16xf32>
    %51 = arith.mulf %4, %50 : vector<1x16xf32>
    %52 = arith.mulf %40, %51 : vector<1x16xf32>
    %53 = arith.subf %5, %52 : vector<1x16xf32>
    %54 = vector.broadcast %51 : vector<1x16xf32> to vector<128x16xf32>
    %55 = arith.mulf %33, %54 : vector<128x16xf32>
    %56 = vector.broadcast %53 : vector<1x16xf32> to vector<128x16xf32>
    %57 = arith.addf %55, %56 : vector<128x16xf32>
    %cst_17 = arith.constant -0.699999988 : f32
    %cst_18 = arith.constant 0.699999988 : f32
    %58 = vector.broadcast %cst_17 : f32 to vector<1x16xf32>
    %59 = arith.maximumf %58, %6 : vector<1x16xf32>
    %60 = vector.broadcast %cst_18 : f32 to vector<1x16xf32>
    %61 = arith.minimumf %60, %59 : vector<1x16xf32>
    %62 = vector.shape_cast %61 : vector<1x16xf32> to vector<1x16xf32>
    %63 = vector.broadcast %62 : vector<1x16xf32> to vector<16x16xf32>
    %64 = vector.shape_cast %57 : vector<128x16xf32> to vector<16x8x16xf32>
    %65 = vector.shape_cast %18 : vector<128x16xf32> to vector<16x8x16xf32>
    %66 = vector.extract_strided_slice %64 {offsets = [0, 0, 0], sizes = [16, 1, 16], strides = [1, 1, 1]} : vector<16x8x16xf32> to vector<16x1x16xf32>
    %67 = vector.shape_cast %66 : vector<16x1x16xf32> to vector<16x16xf32>
    %68 = arith.mulf %67, %63 : vector<16x16xf32>
    %69 = vector.extract_strided_slice %65 {offsets = [0, 0, 0], sizes = [16, 1, 16], strides = [1, 1, 1]} : vector<16x8x16xf32> to vector<16x1x16xf32>
    %70 = vector.shape_cast %69 : vector<16x1x16xf32> to vector<16x16xf32>
    %71 = arith.addf %68, %70 : vector<16x16xf32>
    %72 = arith.mulf %71, %63 : vector<16x16xf32>
    %73 = vector.extract_strided_slice %65 {offsets = [0, 1, 0], sizes = [16, 1, 16], strides = [1, 1, 1]} : vector<16x8x16xf32> to vector<16x1x16xf32>
    %74 = vector.shape_cast %73 : vector<16x1x16xf32> to vector<16x16xf32>
    %75 = arith.addf %72, %74 : vector<16x16xf32>
    %76 = arith.mulf %75, %63 : vector<16x16xf32>
    %77 = vector.extract_strided_slice %65 {offsets = [0, 2, 0], sizes = [16, 1, 16], strides = [1, 1, 1]} : vector<16x8x16xf32> to vector<16x1x16xf32>
    %78 = vector.shape_cast %77 : vector<16x1x16xf32> to vector<16x16xf32>
    %79 = arith.addf %76, %78 : vector<16x16xf32>
    %80 = arith.mulf %79, %63 : vector<16x16xf32>
    %81 = vector.extract_strided_slice %65 {offsets = [0, 3, 0], sizes = [16, 1, 16], strides = [1, 1, 1]} : vector<16x8x16xf32> to vector<16x1x16xf32>
    %82 = vector.shape_cast %81 : vector<16x1x16xf32> to vector<16x16xf32>
    %83 = arith.addf %80, %82 : vector<16x16xf32>
    %84 = arith.mulf %83, %63 : vector<16x16xf32>
    %85 = vector.extract_strided_slice %65 {offsets = [0, 4, 0], sizes = [16, 1, 16], strides = [1, 1, 1]} : vector<16x8x16xf32> to vector<16x1x16xf32>
    %86 = vector.shape_cast %85 : vector<16x1x16xf32> to vector<16x16xf32>
    %87 = arith.addf %84, %86 : vector<16x16xf32>
    %88 = arith.mulf %87, %63 : vector<16x16xf32>
    %89 = vector.extract_strided_slice %65 {offsets = [0, 5, 0], sizes = [16, 1, 16], strides = [1, 1, 1]} : vector<16x8x16xf32> to vector<16x1x16xf32>
    %90 = vector.shape_cast %89 : vector<16x1x16xf32> to vector<16x16xf32>
    %91 = arith.addf %88, %90 : vector<16x16xf32>
    %92 = arith.mulf %91, %63 : vector<16x16xf32>
    %93 = vector.extract_strided_slice %65 {offsets = [0, 6, 0], sizes = [16, 1, 16], strides = [1, 1, 1]} : vector<16x8x16xf32> to vector<16x1x16xf32>
    %94 = vector.shape_cast %93 : vector<16x1x16xf32> to vector<16x16xf32>
    %95 = arith.addf %92, %94 : vector<16x16xf32>
    %96 = arith.mulf %95, %63 : vector<16x16xf32>
    %97 = vector.extract_strided_slice %65 {offsets = [0, 7, 0], sizes = [16, 1, 16], strides = [1, 1, 1]} : vector<16x8x16xf32> to vector<16x1x16xf32>
    %98 = vector.shape_cast %97 : vector<16x1x16xf32> to vector<16x16xf32>
    %99 = arith.addf %96, %98 : vector<16x16xf32>
    %100 = tpu.concatenate %71, %75, %79, %83, %87, %91, %95, %99 in 0 : vector<16x16xf32>, vector<16x16xf32>, vector<16x16xf32>, vector<16x16xf32>, vector<16x16xf32>, vector<16x16xf32>, vector<16x16xf32>, vector<16x16xf32> -> vector<128x16xf32>
    %c0_19 = arith.constant 0 : index
    %c0_20 = arith.constant 0 : index
    %101 = vector.load %arg4[%c0_19, %c0_20] : memref<32x256xbf16, #tpu.memory_space<vmem>>, vector<32x256xbf16>
    %c0_21 = arith.constant 0 : index
    %c0_22 = arith.constant 0 : index
    %102 = vector.load %arg3[%c0_21, %c0_22] : memref<16x32xbf16, #tpu.memory_space<vmem>>, vector<16x32xbf16>
    %103 = arith.truncf %100 : vector<128x16xf32> to vector<128x16xbf16>
    %cst_23 = arith.constant dense<0.000000e+00> : vector<128x32xf32>
    %104 = tpu.matmul %103, %102, %cst_23 {dimension_numbers = #tpu.dot_dimension_numbers<[1], [0], [0], [1], [0, 0, 1, 1], [], []>} : vector<128x16xbf16>, vector<16x32xbf16>, vector<128x32xf32> -> vector<128x32xf32>
    %105 = vector.broadcast %7 : vector<1x32xf32> to vector<128x32xf32>
    %106 = arith.addf %104, %105 : vector<128x32xf32>
    %cst_24 = arith.constant 0.000000e+00 : f32
    %107 = vector.broadcast %cst_24 : f32 to vector<128x32xf32>
    %108 = arith.maximumf %106, %107 : vector<128x32xf32>
    %109 = vector.extract_strided_slice %101 {offsets = [0, 0], sizes = [32, 32], strides = [1, 1]} : vector<32x256xbf16> to vector<32x32xbf16>
    %110 = arith.truncf %108 : vector<128x32xf32> to vector<128x32xbf16>
    %cst_25 = arith.constant dense<0.000000e+00> : vector<128x32xf32>
    %111 = tpu.matmul %110, %109, %cst_25 {dimension_numbers = #tpu.dot_dimension_numbers<[1], [0], [0], [1], [0, 0, 1, 1], [], []>} : vector<128x32xbf16>, vector<32x32xbf16>, vector<128x32xf32> -> vector<128x32xf32>
    %112 = vector.broadcast %8 : vector<1x32xf32> to vector<128x32xf32>
    %113 = arith.addf %111, %112 : vector<128x32xf32>
    %cst_26 = arith.constant 0.000000e+00 : f32
    %114 = vector.broadcast %cst_26 : f32 to vector<128x32xf32>
    %115 = arith.maximumf %113, %114 : vector<128x32xf32>
    %116 = vector.extract_strided_slice %101 {offsets = [0, 128], sizes = [32, 128], strides = [1, 1]} : vector<32x256xbf16> to vector<32x128xbf16>
    %117 = arith.truncf %115 : vector<128x32xf32> to vector<128x32xbf16>
    %cst_27 = arith.constant dense<0.000000e+00> : vector<128x128xf32>
    %118 = tpu.matmul %117, %116, %cst_27 {dimension_numbers = #tpu.dot_dimension_numbers<[1], [0], [0], [1], [0, 0, 1, 1], [], []>} : vector<128x32xbf16>, vector<32x128xbf16>, vector<128x128xf32> -> vector<128x128xf32>
    %119 = vector.broadcast %9 : vector<1x128xf32> to vector<128x128xf32>
    %120 = arith.addf %118, %119 : vector<128x128xf32>
    %c0_28 = arith.constant 0 : index
    %c0_29 = arith.constant 0 : index
    %121 = vector.load %arg6[%c0_28, %c0_29] : memref<128x128xf32, #tpu.memory_space<vmem>>, vector<128x128xf32>
    tpu.vector_store %arg6[%c0_28, %c0_29], %120 {strides = array<i32>} : memref<128x128xf32, #tpu.memory_space<vmem>>, vector<128x128xf32>,
    return
  }
}

</mosaic_0001>

<llo_original>
// kernel: tpu_custom_call.1
$region0: #{tpu_custom_call.1}
  #allocation0 [shape = 'u32[]', space=smem, size = 0x4, offset = 0x4, fixed_abs, tag = 'smem constant byte address 0x4 - core index']
  #allocation1 [shape = 'u32[144,128]{1,0:T(1,128)}', space=vmem, size = 0x12000, scoped, tag = 'internal scratch']
  %s0 = inlined_call_operand.vmem [shape: bf16[128,16], index: 0, kind: input, shape index: {}]
  %s1 = inlined_call_operand.hbm [shape: bf16[16,256], index: 1, kind: input, shape index: {}]
  %s2 = inlined_call_operand.vmem [shape: bf16[32,144], index: 2, kind: input, shape index: {}]
  %s3 = inlined_call_operand.hbm [shape: bf16[16,32], index: 3, kind: input, shape index: {}]
  %s4 = inlined_call_operand.vmem [shape: bf16[32,256], index: 4, kind: input, shape index: {}]
  %s5 = inlined_call_operand.vmem [shape: f32[9,128], index: 5, kind: input, shape index: {}]
  %s6 = inlined_call_operand.hbm [shape: f32[128,128], index: 6, kind: output, shape index: {}]
  %s7 = sld [smem:[#allocation0]]
  $region42: #{tpu_custom_call.1} parent=0
    _
  %s9 = ssub.s32 1, %s7
  %s10 = scalar_select 0, %s9, %s7
  $region1: #{tpu_custom_call.1} parent=0
    #allocation2 [shape = 'u8[8192]{0}', space=vmem, size = 0x2000, scoped, tag = 'input window, operand 1, single buffered']
    #allocation3 [shape = 's32[1]{0}', space=sflag, size = 0x4, scoped, tag = 'scoped memory for tpu_custom_call.1']
    #allocation4 [shape = 's32[1]{0}', space=sflag, size = 0x4, scoped, tag = 'scoped memory for tpu_custom_call.1']
    #allocation5 [shape = 'u8[4096]{0}', space=vmem, size = 0x1000, scoped, tag = 'input window, operand 3, single buffered']
    #allocation6 [shape = 's32[1]{0}', space=sflag, size = 0x4, scoped, tag = 'scoped memory for tpu_custom_call.1']
    #allocation7 [shape = 'u8[65536]{0}', space=vmem, size = 0x10000, scoped, tag = 'output window, operand 0, single buffered']
    %11 = vsyncpa [#allocation3], 0
    %12 = vsyncpa [#allocation6], 0
    %13 = vsyncpa [#allocation4], 0
    // Predicated region
    $region2: #{tpu_custom_call.1} parent=1 // pred_check
      _
    $region3: #{tpu_custom_call.1} parent=1 // pred_check_branch
      %15 = sbr.rel (0) target = $region5
    $region4: #{tpu_custom_call.1} parent=1 // pred_region
      _
    $region5: #{tpu_custom_call.1} parent=1 // pred_fallthru
      _
    // Predicated region
    $region6: #{tpu_custom_call.1} parent=1 // pred_check
      _
    $region7: #{tpu_custom_call.1} parent=1 // pred_check_branch
      %17 = sbr.rel (0) target = $region9
    $region8: #{tpu_custom_call.1} parent=1 // pred_region
      %s19 = ssub.s32 256, 256
      %20 = vsyncadd [#allocation3], %s19
      %s21 = sshll.u32 [#allocation2], 4
      %s22 = int_to_ptr.vmem [resolvable:$true] %s21
      %27 = dma.hbm_to_vmem [thread:$0]  %s1, 256, %s22, [#allocation3], 128, 128, 8
    $region9: #{tpu_custom_call.1} parent=1 // pred_fallthru
      _
    // Predicated region
    $region10: #{tpu_custom_call.1} parent=1 // pred_check
      _
    $region11: #{tpu_custom_call.1} parent=1 // pred_check_branch
      %29 = sbr.rel (0) target = $region13
    $region12: #{tpu_custom_call.1} parent=1 // pred_region
      _
    $region13: #{tpu_custom_call.1} parent=1 // pred_fallthru
      _
    // Predicated region
    $region14: #{tpu_custom_call.1} parent=1 // pred_check
      _
    $region15: #{tpu_custom_call.1} parent=1 // pred_check_branch
      %31 = sbr.rel (0) target = $region17
    $region16: #{tpu_custom_call.1} parent=1 // pred_region
      %s33 = ssub.s32 128, 128
      %34 = vsyncadd [#allocation6], %s33
      %s35 = sshll.u32 [#allocation5], 4
      %s36 = int_to_ptr.vmem [resolvable:$true] %s35
      %41 = dma.hbm_to_vmem [thread:$0]  %s3, 128, %s36, [#allocation6], 64, 64, 4
    $region17: #{tpu_custom_call.1} parent=1 // pred_fallthru
      _
    // Predicated region
    $region18: #{tpu_custom_call.1} parent=1 // pred_check
      _
    $region19: #{tpu_custom_call.1} parent=1 // pred_check_branch
      %43 = sbr.rel (0) target = $region21
    $region20: #{tpu_custom_call.1} parent=1 // pred_region
      _
    $region21: #{tpu_custom_call.1} parent=1 // pred_fallthru
      _
    // Predicated region
    $region22: #{tpu_custom_call.1} parent=1 // pred_check
      _
    $region23: #{tpu_custom_call.1} parent=1 // pred_check_branch
      %45 = sbr.rel (0) target = $region25
    $region24: #{tpu_custom_call.1} parent=1 // pred_region
      _
    $region25: #{tpu_custom_call.1} parent=1 // pred_fallthru
      _
    // Predicated region
    $region26: #{tpu_custom_call.1} parent=1 // pred_check
      _
    $region27: #{tpu_custom_call.1} parent=1 // pred_check_branch
      %47 = sbr.rel (0) target = $region29
    $region28: #{tpu_custom_call.1} parent=1 // pred_region
      %48 = dma.done [#allocation3], 256
    $region29: #{tpu_custom_call.1} parent=1 // pred_fallthru
      _
    // Predicated region
    $region30: #{tpu_custom_call.1} parent=1 // pred_check
      _
    $region31: #{tpu_custom_call.1} parent=1 // pred_check_branch
      %50 = sbr.rel (0) target = $region33
    $region32: #{tpu_custom_call.1} parent=1 // pred_region
      %51 = dma.done [#allocation6], 128
    $region33: #{tpu_custom_call.1} parent=1 // pred_fallthru
      _
    %v53 = vld [vmem:[%s5] sm:$0xff]
    %v54 = vld [vmem:[%s5 + $0x8] sm:$0x1]
    %v55 = vld [vmem:[%s0] sm:$0xf]
    %v56 = vld [vmem:[%s0 + $0x4] sm:$0xf]
    %v57 = vld [vmem:[%s0 + $0x8] sm:$0xf]
    %v58 = vld [vmem:[%s0 + $0xc] sm:$0xf]
    %v59 = vld [vmem:[%s0 + $0x10] sm:$0xf]
    %v60 = vld [vmem:[%s0 + $0x14] sm:$0xf]
    %v61 = vld [vmem:[%s0 + $0x18] sm:$0xf]
    %v62 = vld [vmem:[%s0 + $0x1c] sm:$0xf]
    %v63 = vld [vmem:[%s0 + $0x20] sm:$0xf]
    %v64 = vld [vmem:[%s0 + $0x24] sm:$0xf]
    %v65 = vld [vmem:[%s0 + $0x28] sm:$0xf]
    %v66 = vld [vmem:[%s0 + $0x2c] sm:$0xf]
    %v67 = vld [vmem:[%s0 + $0x30] sm:$0xf]
    %v68 = vld [vmem:[%s0 + $0x34] sm:$0xf]
    %v69 = vld [vmem:[%s0 + $0x38] sm:$0xf]
    %v70 = vld [vmem:[%s0 + $0x3c] sm:$0xf]
    %v71 = vld [vmem:[#allocation2] sm:$0xff]
    %v72 = vld [vmem:[#allocation2 + $0x8] sm:$0xff]
    %v89 = vunpack.c.l.b16 %v55
    %v90 = vunpack.c.l.b16 %v56
    %v91 = vunpack.c.l.b16 %v57
    %v92 = vunpack.c.l.b16 %v58
    %v93 = vunpack.c.l.b16 %v59
    %v94 = vunpack.c.l.b16 %v60
    %v95 = vunpack.c.l.b16 %v61
    %v96 = vunpack.c.l.b16 %v62
    %v97 = vunpack.c.l.b16 %v63
    %v98 = vunpack.c.l.b16 %v64
    %v99 = vunpack.c.l.b16 %v65
    %v100 = vunpack.c.l.b16 %v66
    %v101 = vunpack.c.l.b16 %v67
    %v102 = vunpack.c.l.b16 %v68
    %v103 = vunpack.c.l.b16 %v69
    %v104 = vunpack.c.l.b16 %v70
    %v105 = vpack.c.b16 %v90, %v89
    %v106 = vpack.c.b16 %v92, %v91
    %v107 = vpack.c.b16 %v94, %v93
    %v108 = vpack.c.b16 %v96, %v95
    %v109 = vpack.c.b16 %v98, %v97
    %v110 = vpack.c.b16 %v100, %v99
    %v111 = vpack.c.b16 %v102, %v101
    %v112 = vpack.c.b16 %v104, %v103
    %v115 = vunpack.c.l.b16 %v71
    %v116 = vunpack.c.h.b16 %v71
    %v117 = vunpack.c.l.b16 %v72
    %v118 = vunpack.c.h.b16 %v72
    %v119 = vpack.c.b16 %v117, %v115
    %v120 = vpack.c.b16 %v118, %v116
    %vm123 = vcmask 130048
    %v125 = vsel %vm123, %v105, 0
    %v128 = vsel %vm123, %v106, 0
    %v131 = vsel %vm123, %v107, 0
    %v134 = vsel %vm123, %v108, 0
    %v137 = vsel %vm123, %v109, 0
    %v140 = vsel %vm123, %v110, 0
    %v143 = vsel %vm123, %v111, 0
    %v146 = vsel %vm123, %v112, 0
    %148 = vmatprep.subr.bf16.mxu0 %v120
    %149 = vmatpush1.bf16.msra.mxu0 %v119
    %150 = vmatprep.subr.bf16.mxu0 0
    %151 = vmatpush1.bf16.msra.mxu0 0
    %152 = vmatprep.subr.bf16.mxu0 0
    %153 = vmatpush1.bf16.msra.mxu0 0
    %154 = vmatprep.subr.bf16.mxu0 0
    %155 = vmatpush1.bf16.msra.mxu0 0
    %156 = vmatprep.subr.bf16.mxu0 0
    %157 = vmatpush1.bf16.msra.mxu0 0
    %158 = vmatprep.subr.bf16.mxu0 0
    %159 = vmatpush1.bf16.msra.mxu0 0
    %160 = vmatprep.subr.bf16.mxu0 0
    %161 = vmatpush1.bf16.msra.mxu0 0
    %162 = vmatprep.subr.bf16.mxu0 0
    %163 = vmatpush1.bf16.msra.mxu0 0
    %164 = vmatprep.subr.bf16.mxu0 0
    %165 = vmatpush1.bf16.msra.mxu0 0
    %166 = vmatprep.subr.bf16.mxu0 0
    %167 = vmatpush1.bf16.msra.mxu0 0
    %168 = vmatprep.subr.bf16.mxu0 0
    %169 = vmatpush1.bf16.msra.mxu0 0
    %170 = vmatprep.subr.bf16.mxu0 0
    %171 = vmatpush1.bf16.msra.mxu0 0
    %172 = vmatprep.subr.bf16.mxu0 0
    %173 = vmatpush1.bf16.msra.mxu0 0
    %174 = vmatprep.subr.bf16.mxu0 0
    %175 = vmatpush1.bf16.msra.mxu0 0
    %176 = vmatprep.subr.bf16.mxu0 0
    %177 = vmatpush1.bf16.msra.mxu0 0
    %178 = vmatprep.subr.bf16.mxu0 0
    %179 = vmatpush1.bf16.msra.mxu0 0
    %180 = vmatprep.mubr.bf16.mxu0 0
    %181 = vmatmul.mubr.bf16.gmra.mrb[0].mxu0 %v125
    %v182 = vpop.f32.mrb[0].mxu0
    %v183 = vadd.f32 0.0, %v182
    %v184 = vpop.f32.mrb[0].mxu0
    %v185 = vadd.f32 0.0, %v184
    %v186 = vpop.f32.mrb[0].mxu0
    %v187 = vadd.f32 0.0, %v186
    %v188 = vpop.f32.mrb[0].mxu0
    %v189 = vadd.f32 0.0, %v188
    %190 = vmatprep.mubr.bf16.mxu0 0
    %191 = vmatmul.mubr.bf16.gmra.mrb[0].mxu0 %v128
    %v192 = vpop.f32.mrb[0].mxu0
    %v193 = vadd.f32 0.0, %v192
    %v194 = vpop.f32.mrb[0].mxu0
    %v195 = vadd.f32 0.0, %v194
    %v196 = vpop.f32.mrb[0].mxu0
    %v197 = vadd.f32 0.0, %v196
    %v198 = vpop.f32.mrb[0].mxu0
    %v199 = vadd.f32 0.0, %v198
    %200 = vmatprep.mubr.bf16.mxu0 0
    %201 = vmatmul.mubr.bf16.gmra.mrb[0].mxu0 %v131
    %v202 = vpop.f32.mrb[0].mxu0
    %v203 = vadd.f32 0.0, %v202
    %v204 = vpop.f32.mrb[0].mxu0
    %v205 = vadd.f32 0.0, %v204
    %v206 = vpop.f32.mrb[0].mxu0
    %v207 = vadd.f32 0.0, %v206
    %v208 = vpop.f32.mrb[0].mxu0
    %v209 = vadd.f32 0.0, %v208
    %210 = vmatprep.mubr.bf16.mxu0 0
    %211 = vmatmul.mubr.bf16.gmra.mrb[0].mxu0 %v134
    %v212 = vpop.f32.mrb[0].mxu0
    %v213 = vadd.f32 0.0, %v212
    %v214 = vpop.f32.mrb[0].mxu0
    %v215 = vadd.f32 0.0, %v214
    %v216 = vpop.f32.mrb[0].mxu0
    %v217 = vadd.f32 0.0, %v216
    %v218 = vpop.f32.mrb[0].mxu0
    %v219 = vadd.f32 0.0, %v218
    %220 = vmatprep.mubr.bf16.mxu0 0
    %221 = vmatmul.mubr.bf16.gmra.mrb[0].mxu0 %v137
    %v222 = vpop.f32.mrb[0].mxu0
    %v223 = vadd.f32 0.0, %v222
    %v224 = vpop.f32.mrb[0].mxu0
    %v225 = vadd.f32 0.0, %v224
    %v226 = vpop.f32.mrb[0].mxu0
    %v227 = vadd.f32 0.0, %v226
    %v228 = vpop.f32.mrb[0].mxu0
    %v229 = vadd.f32 0.0, %v228
    %230 = vmatprep.mubr.bf16.mxu0 0
    %231 = vmatmul.mubr.bf16.gmra.mrb[0].mxu0 %v140
    %v232 = vpop.f32.mrb[0].mxu0
    %v233 = vadd.f32 0.0, %v232
    %v234 = vpop.f32.mrb[0].mxu0
    %v235 = vadd.f32 0.0, %v234
    %v236 = vpop.f32.mrb[0].mxu0
    %v237 = vadd.f32 0.0, %v236
    %v238 = vpop.f32.mrb[0].mxu0
    %v239 = vadd.f32 0.0, %v238
    %240 = vmatprep.mubr.bf16.mxu0 0
    %241 = vmatmul.mubr.bf16.gmra.mrb[0].mxu0 %v143
    %v242 = vpop.f32.mrb[0].mxu0
    %v243 = vadd.f32 0.0, %v242
    %v244 = vpop.f32.mrb[0].mxu0
    %v245 = vadd.f32 0.0, %v244
    %v246 = vpop.f32.mrb[0].mxu0
    %v247 = vadd.f32 0.0, %v246
    %v248 = vpop.f32.mrb[0].mxu0
    %v249 = vadd.f32 0.0, %v248
    %250 = vmatprep.mubr.bf16.mxu0 0
    %251 = vmatmul.mubr.bf16.gmra.mrb[0].mxu0 %v146
    %v252 = vpop.f32.mrb[0].mxu0
    %v253 = vadd.f32 0.0, %v252
    %v254 = vpop.f32.mrb[0].mxu0
    %v255 = vadd.f32 0.0, %v254
    %v256 = vpop.f32.mrb[0].mxu0
    %v257 = vadd.f32 0.0, %v256
    %v258 = vpop.f32.mrb[0].mxu0
    %v259 = vadd.f32 0.0, %v258
    %260 = vdwg.mxu0
    %v261 = vlaneseq
    %v262 = vshrl.u32 %v261, 7
    %v263 = vsub.s32 0, %v262
    %v264 = vrot.slane %v53, %v263
    %v265 = vadd.f32 %v183, %v264
    %v266 = vadd.f32 %v187, %v264
    %v267 = vadd.f32 %v193, %v264
    %v268 = vadd.f32 %v197, %v264
    %v269 = vadd.f32 %v203, %v264
    %v270 = vadd.f32 %v207, %v264
    %v271 = vadd.f32 %v213, %v264
    %v272 = vadd.f32 %v217, %v264
    %v273 = vadd.f32 %v223, %v264
    %v274 = vadd.f32 %v227, %v264
    %v275 = vadd.f32 %v233, %v264
    %v276 = vadd.f32 %v237, %v264
    %v277 = vadd.f32 %v243, %v264
    %v278 = vadd.f32 %v247, %v264
    %v279 = vadd.f32 %v253, %v264
    %v280 = vadd.f32 %v257, %v264
    %v281 = vmax.f32 %v265, 0.0
    %v282 = vmax.f32 %v266, 0.0
    %v283 = vmax.f32 %v267, 0.0
    %v284 = vmax.f32 %v268, 0.0
    %v285 = vmax.f32 %v269, 0.0
    %v286 = vmax.f32 %v270, 0.0
    %v287 = vmax.f32 %v271, 0.0
    %v288 = vmax.f32 %v272, 0.0
    %v289 = vmax.f32 %v273, 0.0
    %v290 = vmax.f32 %v274, 0.0
    %v291 = vmax.f32 %v275, 0.0
    %v292 = vmax.f32 %v276, 0.0
    %v293 = vmax.f32 %v277, 0.0
    %v294 = vmax.f32 %v278, 0.0
    %v295 = vmax.f32 %v279, 0.0
    %v296 = vmax.f32 %v280, 0.0
    %v297 = vld [vmem:[%s2] sm:$0xff]
    %v298 = vld [vmem:[%s2 + $0x8] sm:$0xff]
    %v299 = vld [vmem:[%s2 + $0x10] sm:$0xff]
    %v300 = vld [vmem:[%s2 + $0x18] sm:$0xff]
    %v301 = vpack.c.bf16 %v282, %v281
    %v302 = vpack.c.bf16 %v284, %v283
    %v303 = vpack.c.bf16 %v286, %v285
    %v304 = vpack.c.bf16 %v288, %v287
    %v305 = vpack.c.bf16 %v290, %v289
    %v306 = vpack.c.bf16 %v292, %v291
    %v307 = vpack.c.bf16 %v294, %v293
    %v308 = vpack.c.bf16 %v296, %v295
    %v309 = vlaneseq
    %v310 = vshrl.u32 %v309, 7
    %v311 = vsub.s32 1, %v310
    %v312 = vrot.slane %v53, %v311
    %v317 = vunpack.c.l.b16 %v297
    %v318 = vunpack.c.l.b16 %v298
    %v319 = vunpack.c.l.b16 %v299
    %v320 = vunpack.c.l.b16 %v300
    %v321 = vpack.c.b16 %v318, %v317
    %v322 = vpack.c.b16 %v320, %v319
    %vm325 = vcmask 261120
    %v327 = vsel %vm325, %v301, 0
    %v330 = vsel %vm325, %v302, 0
    %v333 = vsel %vm325, %v303, 0
    %v336 = vsel %vm325, %v304, 0
    %v339 = vsel %vm325, %v305, 0
    %v342 = vsel %vm325, %v306, 0
    %v345 = vsel %vm325, %v307, 0
    %v348 = vsel %vm325, %v308, 0
    %350 = vmatprep.subr.bf16.mxu0 0
    %351 = vmatpush1.bf16.msra.mxu0 %v321
    %352 = vmatprep.subr.bf16.mxu0 0
    %353 = vmatpush1.bf16.msra.mxu0 %v322
    %354 = vmatprep.subr.bf16.mxu0 0
    %355 = vmatpush1.bf16.msra.mxu0 0
    %356 = vmatprep.subr.bf16.mxu0 0
    %357 = vmatpush1.bf16.msra.mxu0 0
    %358 = vmatprep.subr.bf16.mxu0 0
    %359 = vmatpush1.bf16.msra.mxu0 0
    %360 = vmatprep.subr.bf16.mxu0 0
    %361 = vmatpush1.bf16.msra.mxu0 0
    %362 = vmatprep.subr.bf16.mxu0 0
    %363 = vmatpush1.bf16.msra.mxu0 0
    %364 = vmatprep.subr.bf16.mxu0 0
    %365 = vmatpush1.bf16.msra.mxu0 0
    %366 = vmatprep.subr.bf16.mxu0 0
    %367 = vmatpush1.bf16.msra.mxu0 0
    %368 = vmatprep.subr.bf16.mxu0 0
    %369 = vmatpush1.bf16.msra.mxu0 0
    %370 = vmatprep.subr.bf16.mxu0 0
    %371 = vmatpush1.bf16.msra.mxu0 0
    %372 = vmatprep.subr.bf16.mxu0 0
    %373 = vmatpush1.bf16.msra.mxu0 0
    %374 = vmatprep.subr.bf16.mxu0 0
    %375 = vmatpush1.bf16.msra.mxu0 0
    %376 = vmatprep.subr.bf16.mxu0 0
    %377 = vmatpush1.bf16.msra.mxu0 0
    %378 = vmatprep.subr.bf16.mxu0 0
    %379 = vmatpush1.bf16.msra.mxu0 0
    %380 = vmatprep.subr.bf16.mxu0 0
    %381 = vmatpush1.bf16.msra.mxu0 0
    %382 = vmatprep.mubr.bf16.mxu0 0
    %383 = vmatmul.mubr.bf16.gmra.mrb[0].mxu0 %v327
    %v384 = vpop.f32.mrb[0].mxu0
    %v385 = vadd.f32 %v312, %v384
    %v386 = vpop.f32.mrb[0].mxu0
    %v387 = vpop.f32.mrb[0].mxu0
    %v388 = vadd.f32 %v312, %v387
    %v389 = vpop.f32.mrb[0].mxu0
    %390 = vmatprep.mubr.bf16.mxu0 0
    %391 = vmatmul.mubr.bf16.gmra.mrb[0].mxu0 %v330
    %v392 = vpop.f32.mrb[0].mxu0
    %v393 = vadd.f32 %v312, %v392
    %v394 = vpop.f32.mrb[0].mxu0
    %v395 = vpop.f32.mrb[0].mxu0
    %v396 = vadd.f32 %v312, %v395
    %v397 = vpop.f32.mrb[0].mxu0
    %398 = vmatprep.mubr.bf16.mxu0 0
    %399 = vmatmul.mubr.bf16.gmra.mrb[0].mxu0 %v333
    %v400 = vpop.f32.mrb[0].mxu0
    %v401 = vadd.f32 %v312, %v400
    %v402 = vpop.f32.mrb[0].mxu0
    %v403 = vpop.f32.mrb[0].mxu0
    %v404 = vadd.f32 %v312, %v403
    %v405 = vpop.f32.mrb[0].mxu0
    %406 = vmatprep.mubr.bf16.mxu0 0
    %407 = vmatmul.mubr.bf16.gmra.mrb[0].mxu0 %v336
    %v408 = vpop.f32.mrb[0].mxu0
    %v409 = vadd.f32 %v312, %v408
    %v410 = vpop.f32.mrb[0].mxu0
    %v411 = vpop.f32.mrb[0].mxu0
    %v412 = vadd.f32 %v312, %v411
    %v413 = vpop.f32.mrb[0].mxu0
    %414 = vmatprep.mubr.bf16.mxu0 0
    %415 = vmatmul.mubr.bf16.gmra.mrb[0].mxu0 %v339
    %v416 = vpop.f32.mrb[0].mxu0
    %v417 = vadd.f32 %v312, %v416
    %v418 = vpop.f32.mrb[0].mxu0
    %v419 = vpop.f32.mrb[0].mxu0
    %v420 = vadd.f32 %v312, %v419
    %v421 = vpop.f32.mrb[0].mxu0
    %422 = vmatprep.mubr.bf16.mxu0 0
    %423 = vmatmul.mubr.bf16.gmra.mrb[0].mxu0 %v342
    %v424 = vpop.f32.mrb[0].mxu0
    %v425 = vadd.f32 %v312, %v424
    %v426 = vpop.f32.mrb[0].mxu0
    %v427 = vpop.f32.mrb[0].mxu0
    %v428 = vadd.f32 %v312, %v427
    %v429 = vpop.f32.mrb[0].mxu0
    %430 = vmatprep.mubr.bf16.mxu0 0
    %431 = vmatmul.mubr.bf16.gmra.mrb[0].mxu0 %v345
    %v432 = vpop.f32.mrb[0].mxu0
    %v433 = vadd.f32 %v312, %v432
    %v434 = vpop.f32.mrb[0].mxu0
    %v435 = vpop.f32.mrb[0].mxu0
    %v436 = vadd.f32 %v312, %v435
    %v437 = vpop.f32.mrb[0].mxu0
    %438 = vmatprep.mubr.bf16.mxu0 0
    %439 = vmatmul.mubr.bf16.gmra.mrb[0].mxu0 %v348
    %v440 = vpop.f32.mrb[0].mxu0
    %v441 = vadd.f32 %v312, %v440
    %v442 = vpop.f32.mrb[0].mxu0
    %v443 = vpop.f32.mrb[0].mxu0
    %v444 = vadd.f32 %v312, %v443
    %v445 = vpop.f32.mrb[0].mxu0
    %446 = vdwg.mxu0
    %v447 = vmax.f32 %v385, 0.0
    %v448 = vmax.f32 %v388, 0.0
    %v449 = vmax.f32 %v393, 0.0
    %v450 = vmax.f32 %v396, 0.0
    %v451 = vmax.f32 %v401, 0.0
    %v452 = vmax.f32 %v404, 0.0
    %v453 = vmax.f32 %v409, 0.0
    %v454 = vmax.f32 %v412, 0.0
    %v455 = vmax.f32 %v417, 0.0
    %v456 = vmax.f32 %v420, 0.0
    %v457 = vmax.f32 %v425, 0.0
    %v458 = vmax.f32 %v428, 0.0
    %v459 = vmax.f32 %v433, 0.0
    %v460 = vmax.f32 %v436, 0.0
    %v461 = vmax.f32 %v441, 0.0
    %v462 = vmax.f32 %v444, 0.0
    %v463 = vpack.c.bf16 %v448, %v447
    %v464 = vpack.c.bf16 %v450, %v449
    %v465 = vpack.c.bf16 %v452, %v451
    %v466 = vpack.c.bf16 %v454, %v453
    %v467 = vpack.c.bf16 %v456, %v455
    %v468 = vpack.c.bf16 %v458, %v457
    %v469 = vpack.c.bf16 %v460, %v459
    %v470 = vpack.c.bf16 %v462, %v461
    %v471 = vlaneseq
    %v472 = vshrl.u32 %v471, 7
    %v473 = vsub.s32 2, %v472
    %v474 = vrot.slane %v53, %v473
    %v475 = vunpack.c.h.b16 %v297
    %v476 = vunpack.c.h.b16 %v298
    %v477 = vunpack.c.h.b16 %v299
    %v478 = vunpack.c.h.b16 %v300
    %v479 = vpack.c.b16 %v476, %v475
    %v480 = vpack.c.b16 %v478, %v477
    %v484 = vsel %vm325, %v463, 0
    %v487 = vsel %vm325, %v464, 0
    %v490 = vsel %vm325, %v465, 0
    %v493 = vsel %vm325, %v466, 0
    %v496 = vsel %vm325, %v467, 0
    %v499 = vsel %vm325, %v468, 0
    %v502 = vsel %vm325, %v469, 0
    %v505 = vsel %vm325, %v470, 0
    %507 = vmatprep.subr.bf16.mxu0 0
    %508 = vmatpush1.bf16.msra.mxu0 %v479
    %509 = vmatprep.subr.bf16.mxu0 0
    %510 = vmatpush1.bf16.msra.mxu0 %v480
    %511 = vmatprep.subr.bf16.mxu0 0
    %512 = vmatpush1.bf16.msra.mxu0 0
    %513 = vmatprep.subr.bf16.mxu0 0
    %514 = vmatpush1.bf16.msra.mxu0 0
    %515 = vmatprep.subr.bf16.mxu0 0
    %516 = vmatpush1.bf16.msra.mxu0 0
    %517 = vmatprep.subr.bf16.mxu0 0
    %518 = vmatpush1.bf16.msra.mxu0 0
    %519 = vmatprep.subr.bf16.mxu0 0
    %520 = vmatpush1.bf16.msra.mxu0 0
    %521 = vmatprep.subr.bf16.mxu0 0
    %522 = vmatpush1.bf16.msra.mxu0 0
    %523 = vmatprep.subr.bf16.mxu0 0
    %524 = vmatpush1.bf16.msra.mxu0 0
    %525 = vmatprep.subr.bf16.mxu0 0
    %526 = vmatpush1.bf16.msra.mxu0 0
    %527 = vmatprep.subr.bf16.mxu0 0
    %528 = vmatpush1.bf16.msra.mxu0 0
    %529 = vmatprep.subr.bf16.mxu0 0
    %530 = vmatpush1.bf16.msra.mxu0 0
    %531 = vmatprep.subr.bf16.mxu0 0
    %532 = vmatpush1.bf16.msra.mxu0 0
    %533 = vmatprep.subr.bf16.mxu0 0
    %534 = vmatpush1.bf16.msra.mxu0 0
    %535 = vmatprep.subr.bf16.mxu0 0
    %536 = vmatpush1.bf16.msra.mxu0 0
    %537 = vmatprep.subr.bf16.mxu0 0
    %538 = vmatpush1.bf16.msra.mxu0 0
    %539 = vmatprep.mubr.bf16.mxu0 0
    %540 = vmatmul.mubr.bf16.gmra.mrb[0].mxu0 %v484
    %v541 = vpop.f32.mrb[0].mxu0
    %v542 = vadd.f32 %v474, %v541
    %v543 = vpop.f32.mrb[0].mxu0
    %v544 = vpop.f32.mrb[0].mxu0
    %v545 = vadd.f32 %v474, %v544
    %v546 = vpop.f32.mrb[0].mxu0
    %547 = vmatprep.mubr.bf16.mxu0 0
    %548 = vmatmul.mubr.bf16.gmra.mrb[0].mxu0 %v487
    %v549 = vpop.f32.mrb[0].mxu0
    %v550 = vadd.f32 %v474, %v549
    %v551 = vpop.f32.mrb[0].mxu0
    %v552 = vpop.f32.mrb[0].mxu0
    %v553 = vadd.f32 %v474, %v552
    %v554 = vpop.f32.mrb[0].mxu0
    %555 = vmatprep.mubr.bf16.mxu0 0
    %556 = vmatmul.mubr.bf16.gmra.mrb[0].mxu0 %v490
    %v557 = vpop.f32.mrb[0].mxu0
    %v558 = vadd.f32 %v474, %v557
    %v559 = vpop.f32.mrb[0].mxu0
    %v560 = vpop.f32.mrb[0].mxu0
    %v561 = vadd.f32 %v474, %v560
    %v562 = vpop.f32.mrb[0].mxu0
    %563 = vmatprep.mubr.bf16.mxu0 0
    %564 = vmatmul.mubr.bf16.gmra.mrb[0].mxu0 %v493
    %v565 = vpop.f32.mrb[0].mxu0
    %v566 = vadd.f32 %v474, %v565
    %v567 = vpop.f32.mrb[0].mxu0
    %v568 = vpop.f32.mrb[0].mxu0
    %v569 = vadd.f32 %v474, %v568
    %v570 = vpop.f32.mrb[0].mxu0
    %571 = vmatprep.mubr.bf16.mxu0 0
    %572 = vmatmul.mubr.bf16.gmra.mrb[0].mxu0 %v496
    %v573 = vpop.f32.mrb[0].mxu0
    %v574 = vadd.f32 %v474, %v573
    %v575 = vpop.f32.mrb[0].mxu0
    %v576 = vpop.f32.mrb[0].mxu0
    %v577 = vadd.f32 %v474, %v576
    %v578 = vpop.f32.mrb[0].mxu0
    %579 = vmatprep.mubr.bf16.mxu0 0
    %580 = vmatmul.mubr.bf16.gmra.mrb[0].mxu0 %v499
    %v581 = vpop.f32.mrb[0].mxu0
    %v582 = vadd.f32 %v474, %v581
    %v583 = vpop.f32.mrb[0].mxu0
    %v584 = vpop.f32.mrb[0].mxu0
    %v585 = vadd.f32 %v474, %v584
    %v586 = vpop.f32.mrb[0].mxu0
    %587 = vmatprep.mubr.bf16.mxu0 0
    %588 = vmatmul.mubr.bf16.gmra.mrb[0].mxu0 %v502
    %v589 = vpop.f32.mrb[0].mxu0
    %v590 = vadd.f32 %v474, %v589
    %v591 = vpop.f32.mrb[0].mxu0
    %v592 = vpop.f32.mrb[0].mxu0
    %v593 = vadd.f32 %v474, %v592
    %v594 = vpop.f32.mrb[0].mxu0
    %595 = vmatprep.mubr.bf16.mxu0 0
    %596 = vmatmul.mubr.bf16.gmra.mrb[0].mxu0 %v505
    %v597 = vpop.f32.mrb[0].mxu0
    %v598 = vadd.f32 %v474, %v597
    %v599 = vpop.f32.mrb[0].mxu0
    %v600 = vpop.f32.mrb[0].mxu0
    %v601 = vadd.f32 %v474, %v600
    %v602 = vpop.f32.mrb[0].mxu0
    %603 = vdwg.mxu0
    %v604 = vmax.f32 %v542, 0.0
    %v605 = vmax.f32 %v545, 0.0
    %v606 = vmax.f32 %v550, 0.0
    %v607 = vmax.f32 %v553, 0.0
    %v608 = vmax.f32 %v558, 0.0
    %v609 = vmax.f32 %v561, 0.0
    %v610 = vmax.f32 %v566, 0.0
    %v611 = vmax.f32 %v569, 0.0
    %v612 = vmax.f32 %v574, 0.0
    %v613 = vmax.f32 %v577, 0.0
    %v614 = vmax.f32 %v582, 0.0
    %v615 = vmax.f32 %v585, 0.0
    %v616 = vmax.f32 %v590, 0.0
    %v617 = vmax.f32 %v593, 0.0
    %v618 = vmax.f32 %v598, 0.0
    %v619 = vmax.f32 %v601, 0.0
    %v620 = vmul.f32 %v604, %v604
    %v621 = vmul.f32 %v605, %v605
    %v622 = vmul.f32 %v606, %v606
    %v623 = vmul.f32 %v607, %v607
    %v624 = vmul.f32 %v608, %v608
    %v625 = vmul.f32 %v609, %v609
    %v626 = vmul.f32 %v610, %v610
    %v627 = vmul.f32 %v611, %v611
    %v628 = vmul.f32 %v612, %v612
    %v629 = vmul.f32 %v613, %v613
    %v630 = vmul.f32 %v614, %v614
    %v631 = vmul.f32 %v615, %v615
    %v632 = vmul.f32 %v616, %v616
    %v633 = vmul.f32 %v617, %v617
    %v634 = vmul.f32 %v618, %v618
    %v635 = vmul.f32 %v619, %v619
    %652 = vrot.lane.b32.xlu0 %v620, 16
    %v653 = vpop.permute.xlu0 %652
    %654 = vrot.lane.b32.xlu0 %v621, 16
    %v655 = vpop.permute.xlu0 %654
    %656 = vrot.lane.b32.xlu0 %v622, 16
    %v657 = vpop.permute.xlu0 %656
    %658 = vrot.lane.b32.xlu0 %v623, 16
    %v659 = vpop.permute.xlu0 %658
    %660 = vrot.lane.b32.xlu0 %v624, 16
    %v661 = vpop.permute.xlu0 %660
    %662 = vrot.lane.b32.xlu0 %v625, 16
    %v663 = vpop.permute.xlu0 %662
    %664 = vrot.lane.b32.xlu0 %v626, 16
    %v665 = vpop.permute.xlu0 %664
    %666 = vrot.lane.b32.xlu0 %v627, 16
    %v667 = vpop.permute.xlu0 %666
    %668 = vrot.lane.b32.xlu0 %v628, 16
    %v669 = vpop.permute.xlu0 %668
    %670 = vrot.lane.b32.xlu0 %v629, 16
    %v671 = vpop.permute.xlu0 %670
    %672 = vrot.lane.b32.xlu0 %v630, 16
    %v673 = vpop.permute.xlu0 %672
    %674 = vrot.lane.b32.xlu0 %v631, 16
    %v675 = vpop.permute.xlu0 %674
    %676 = vrot.lane.b32.xlu0 %v632, 16
    %v677 = vpop.permute.xlu0 %676
    %678 = vrot.lane.b32.xlu0 %v633, 16
    %v679 = vpop.permute.xlu0 %678
    %680 = vrot.lane.b32.xlu0 %v634, 16
    %v681 = vpop.permute.xlu0 %680
    %682 = vrot.lane.b32.xlu0 %v635, 16
    %v683 = vpop.permute.xlu0 %682
    %v700 = vsel %vm123, %v604, %v653
    %v701 = vsel %vm123, %v605, %v655
    %v702 = vsel %vm123, %v606, %v657
    %v703 = vsel %vm123, %v607, %v659
    %v704 = vsel %vm123, %v608, %v661
    %v705 = vsel %vm123, %v609, %v663
    %v706 = vsel %vm123, %v610, %v665
    %v707 = vsel %vm123, %v611, %v667
    %v708 = vsel %vm123, %v612, %v669
    %v709 = vsel %vm123, %v613, %v671
    %v710 = vsel %vm123, %v614, %v673
    %v711 = vsel %vm123, %v615, %v675
    %v712 = vsel %vm123, %v616, %v677
    %v713 = vsel %vm123, %v617, %v679
    %v714 = vsel %vm123, %v618, %v681
    %v715 = vsel %vm123, %v619, %v683
    %v716 = vsel %vm325, %v700, 0.0
    %v717 = vsel %vm325, %v701, 0.0
    %v718 = vadd.f32 %v716, %v717
    %v719 = vsel %vm325, %v702, 0.0
    %v720 = vadd.f32 %v718, %v719
    %v721 = vsel %vm325, %v703, 0.0
    %v722 = vadd.f32 %v720, %v721
    %v723 = vsel %vm325, %v704, 0.0
    %v724 = vadd.f32 %v722, %v723
    %v725 = vsel %vm325, %v705, 0.0
    %v726 = vadd.f32 %v724, %v725
    %v727 = vsel %vm325, %v706, 0.0
    %v728 = vadd.f32 %v726, %v727
    %v729 = vsel %vm325, %v707, 0.0
    %v730 = vadd.f32 %v728, %v729
    %v731 = vsel %vm325, %v708, 0.0
    %v732 = vadd.f32 %v730, %v731
    %v733 = vsel %vm325, %v709, 0.0
    %v734 = vadd.f32 %v732, %v733
    %v735 = vsel %vm325, %v710, 0.0
    %v736 = vadd.f32 %v734, %v735
    %v737 = vsel %vm325, %v711, 0.0
    %v738 = vadd.f32 %v736, %v737
    %v739 = vsel %vm325, %v712, 0.0
    %v740 = vadd.f32 %v738, %v739
    %v741 = vsel %vm325, %v713, 0.0
    %v742 = vadd.f32 %v740, %v741
    %v743 = vsel %vm325, %v714, 0.0
    %v744 = vadd.f32 %v742, %v743
    %v745 = vsel %vm325, %v715, 0.0
    %v746 = vadd.f32 %v744, %v745
    %v747 = vrot.slane %v746, 4
    %v748 = vadd.f32 %v746, %v747
    %v749 = vrot.slane %v748, 2
    %v750 = vadd.f32 %v748, %v749
    %v751 = vrot.slane %v750, 1
    %v752 = vadd.f32 %v750, %v751
    %v753 = vmul.f32 %v752, 0.0078125
    %v754 = vmul.f32 %v753, %v753
    %756 = vrot.lane.b32.xlu0 %v754, 16
    %v757 = vpop.permute.xlu0 %756
    %v759 = vsub.f32 %v753, %v757
    %v760 = vmax.f32 %v759, 0.0
    %v761 = vadd.f32 %v760, 1e-05
    %v762 = vrsqrt.pop %v761
    %v764 = vrot.slane %v762, 5
    %765 = vrot.lane.b32.xlu0 %v764, 112
    %v766 = vpop.permute.xlu0 %765
    %v768 = vmul.f32 %v53, %v766
    %v769 = vmul.f32 %v753, %v768
    %v771 = vrot.slane %v769, 7
    %v773 = vsub.f32 %v53, %v771
    %v774 = vlaneseq
    %v775 = vshrl.u32 %v774, 7
    %v776 = vsub.s32 3, %v775
    %v777 = vrot.slane %v768, %v776
    %v778 = vmul.f32 %v604, %v777
    %v779 = vmul.f32 %v605, %v777
    %v780 = vmul.f32 %v606, %v777
    %v781 = vmul.f32 %v607, %v777
    %v782 = vmul.f32 %v608, %v777
    %v783 = vmul.f32 %v609, %v777
    %v784 = vmul.f32 %v610, %v777
    %v785 = vmul.f32 %v611, %v777
    %v786 = vmul.f32 %v612, %v777
    %v787 = vmul.f32 %v613, %v777
    %v788 = vmul.f32 %v614, %v777
    %v789 = vmul.f32 %v615, %v777
    %v790 = vmul.f32 %v616, %v777
    %v791 = vmul.f32 %v617, %v777
    %v792 = vmul.f32 %v618, %v777
    %v793 = vmul.f32 %v619, %v777
    %v794 = vlaneseq
    %v795 = vshrl.u32 %v794, 7
    %v796 = vsub.s32 4, %v795
    %v797 = vrot.slane %v773, %v796
    %v798 = vadd.f32 %v778, %v797
    %v799 = vadd.f32 %v779, %v797
    %v800 = vadd.f32 %v780, %v797
    %v801 = vadd.f32 %v781, %v797
    %v802 = vadd.f32 %v782, %v797
    %v803 = vadd.f32 %v783, %v797
    %v804 = vadd.f32 %v784, %v797
    %v805 = vadd.f32 %v785, %v797
    %v806 = vadd.f32 %v786, %v797
    %v807 = vadd.f32 %v787, %v797
    %v808 = vadd.f32 %v788, %v797
    %v809 = vadd.f32 %v789, %v797
    %v810 = vadd.f32 %v790, %v797
    %v811 = vadd.f32 %v791, %v797
    %v812 = vadd.f32 %v792, %v797
    %v813 = vadd.f32 %v793, %v797
    %v814 = vmax.f32 %v53, -0.7
    %v815 = vmin.f32 %v814, 0.7
    %v816 = vlaneseq
    %v817 = vshrl.u32 %v816, 7
    %v818 = vsub.s32 5, %v817
    %v819 = vrot.slane %v815, %v818
    %v820 = vmul.f32 %v798, %v819
    %v821 = vmul.f32 %v799, %v819
    %v822 = vmul.f32 %v800, %v819
    %v823 = vmul.f32 %v801, %v819
    %v824 = vmul.f32 %v802, %v819
    %v825 = vmul.f32 %v803, %v819
    %v826 = vmul.f32 %v804, %v819
    %v827 = vmul.f32 %v805, %v819
    %v828 = vmul.f32 %v806, %v819
    %v829 = vmul.f32 %v807, %v819
    %v830 = vmul.f32 %v808, %v819
    %v831 = vmul.f32 %v809, %v819
    %v832 = vmul.f32 %v810, %v819
    %v833 = vmul.f32 %v811, %v819
    %v834 = vmul.f32 %v812, %v819
    %v835 = vmul.f32 %v813, %v819
    %v836 = vadd.f32 %v820, %v185
    %v837 = vadd.f32 %v821, %v189
    %v838 = vadd.f32 %v822, %v195
    %v839 = vadd.f32 %v823, %v199
    %v840 = vadd.f32 %v824, %v205
    %v841 = vadd.f32 %v825, %v209
    %v842 = vadd.f32 %v826, %v215
    %v843 = vadd.f32 %v827, %v219
    %v844 = vadd.f32 %v828, %v225
    %v845 = vadd.f32 %v829, %v229
    %v846 = vadd.f32 %v830, %v235
    %v847 = vadd.f32 %v831, %v239
    %v848 = vadd.f32 %v832, %v245
    %v849 = vadd.f32 %v833, %v249
    %v850 = vadd.f32 %v834, %v255
    %v851 = vadd.f32 %v835, %v259
    %v852 = vmul.f32 %v836, %v819
    %v853 = vmul.f32 %v837, %v819
    %v854 = vmul.f32 %v838, %v819
    %v855 = vmul.f32 %v839, %v819
    %v856 = vmul.f32 %v840, %v819
    %v857 = vmul.f32 %v841, %v819
    %v858 = vmul.f32 %v842, %v819
    %v859 = vmul.f32 %v843, %v819
    %v860 = vmul.f32 %v844, %v819
    %v861 = vmul.f32 %v845, %v819
    %v862 = vmul.f32 %v846, %v819
    %v863 = vmul.f32 %v847, %v819
    %v864 = vmul.f32 %v848, %v819
    %v865 = vmul.f32 %v849, %v819
    %v866 = vmul.f32 %v850, %v819
    %v867 = vmul.f32 %v851, %v819
    %v884 = vrot.slane %v185, 1
    %v885 = vrot.slane %v189, 1
    %v886 = vrot.slane %v195, 1
    %v887 = vrot.slane %v199, 1
    %v888 = vrot.slane %v205, 1
    %v889 = vrot.slane %v209, 1
    %v890 = vrot.slane %v215, 1
    %v891 = vrot.slane %v219, 1
    %v892 = vrot.slane %v225, 1
    %v893 = vrot.slane %v229, 1
    %v894 = vrot.slane %v235, 1
    %v895 = vrot.slane %v239, 1
    %v896 = vrot.slane %v245, 1
    %v897 = vrot.slane %v249, 1
    %v898 = vrot.slane %v255, 1
    %v899 = vrot.slane %v259, 1
    %v916 = vadd.f32 %v852, %v884
    %v917 = vadd.f32 %v853, %v885
    %v918 = vadd.f32 %v854, %v886
    %v919 = vadd.f32 %v855, %v887
    %v920 = vadd.f32 %v856, %v888
    %v921 = vadd.f32 %v857, %v889
    %v922 = vadd.f32 %v858, %v890
    %v923 = vadd.f32 %v859, %v891
    %v924 = vadd.f32 %v860, %v892
    %v925 = vadd.f32 %v861, %v893
    %v926 = vadd.f32 %v862, %v894
    %v927 = vadd.f32 %v863, %v895
    %v928 = vadd.f32 %v864, %v896
    %v929 = vadd.f32 %v865, %v897
    %v930 = vadd.f32 %v866, %v898
    %v931 = vadd.f32 %v867, %v899
    %v932 = vmul.f32 %v916, %v819
    %v933 = vmul.f32 %v917, %v819
    %v934 = vmul.f32 %v918, %v819
    %v935 = vmul.f32 %v919, %v819
    %v936 = vmul.f32 %v920, %v819
    %v937 = vmul.f32 %v921, %v819
    %v938 = vmul.f32 %v922, %v819
    %v939 = vmul.f32 %v923, %v819
    %v940 = vmul.f32 %v924, %v819
    %v941 = vmul.f32 %v925, %v819
    %v942 = vmul.f32 %v926, %v819
    %v943 = vmul.f32 %v927, %v819
    %v944 = vmul.f32 %v928, %v819
    %v945 = vmul.f32 %v929, %v819
    %v946 = vmul.f32 %v930, %v819
    %v947 = vmul.f32 %v931, %v819
    %v948 = vrot.slane %v185, 2
    %v949 = vrot.slane %v189, 2
    %v950 = vrot.slane %v195, 2
    %v951 = vrot.slane %v199, 2
    %v952 = vrot.slane %v205, 2
    %v953 = vrot.slane %v209, 2
    %v954 = vrot.slane %v215, 2
    %v955 = vrot.slane %v219, 2
    %v956 = vrot.slane %v225, 2
    %v957 = vrot.slane %v229, 2
    %v958 = vrot.slane %v235, 2
    %v959 = vrot.slane %v239, 2
    %v960 = vrot.slane %v245, 2
    %v961 = vrot.slane %v249, 2
    %v962 = vrot.slane %v255, 2
    %v963 = vrot.slane %v259, 2
    %v980 = vadd.f32 %v932, %v948
    %v981 = vadd.f32 %v933, %v949
    %v982 = vadd.f32 %v934, %v950
    %v983 = vadd.f32 %v935, %v951
    %v984 = vadd.f32 %v936, %v952
    %v985 = vadd.f32 %v937, %v953
    %v986 = vadd.f32 %v938, %v954
    %v987 = vadd.f32 %v939, %v955
    %v988 = vadd.f32 %v940, %v956
    %v989 = vadd.f32 %v941, %v957
    %v990 = vadd.f32 %v942, %v958
    %v991 = vadd.f32 %v943, %v959
    %v992 = vadd.f32 %v944, %v960
    %v993 = vadd.f32 %v945, %v961
    %v994 = vadd.f32 %v946, %v962
    %v995 = vadd.f32 %v947, %v963
    %v996 = vmul.f32 %v980, %v819
    %v997 = vmul.f32 %v981, %v819
    %v998 = vmul.f32 %v982, %v819
    %v999 = vmul.f32 %v983, %v819
    %v1000 = vmul.f32 %v984, %v819
    %v1001 = vmul.f32 %v985, %v819
    %v1002 = vmul.f32 %v986, %v819
    %v1003 = vmul.f32 %v987, %v819
    %v1004 = vmul.f32 %v988, %v819
    %v1005 = vmul.f32 %v989, %v819
    %v1006 = vmul.f32 %v990, %v819
    %v1007 = vmul.f32 %v991, %v819
    %v1008 = vmul.f32 %v992, %v819
    %v1009 = vmul.f32 %v993, %v819
    %v1010 = vmul.f32 %v994, %v819
    %v1011 = vmul.f32 %v995, %v819
    %v1012 = vrot.slane %v185, 3
    %v1013 = vrot.slane %v189, 3
    %v1014 = vrot.slane %v195, 3
    %v1015 = vrot.slane %v199, 3
    %v1016 = vrot.slane %v205, 3
    %v1017 = vrot.slane %v209, 3
    %v1018 = vrot.slane %v215, 3
    %v1019 = vrot.slane %v219, 3
    %v1020 = vrot.slane %v225, 3
    %v1021 = vrot.slane %v229, 3
    %v1022 = vrot.slane %v235, 3
    %v1023 = vrot.slane %v239, 3
    %v1024 = vrot.slane %v245, 3
    %v1025 = vrot.slane %v249, 3
    %v1026 = vrot.slane %v255, 3
    %v1027 = vrot.slane %v259, 3
    %v1044 = vadd.f32 %v996, %v1012
    %v1045 = vadd.f32 %v997, %v1013
    %v1046 = vadd.f32 %v998, %v1014
    %v1047 = vadd.f32 %v999, %v1015
    %v1048 = vadd.f32 %v1000, %v1016
    %v1049 = vadd.f32 %v1001, %v1017
    %v1050 = vadd.f32 %v1002, %v1018
    %v1051 = vadd.f32 %v1003, %v1019
    %v1052 = vadd.f32 %v1004, %v1020
    %v1053 = vadd.f32 %v1005, %v1021
    %v1054 = vadd.f32 %v1006, %v1022
    %v1055 = vadd.f32 %v1007, %v1023
    %v1056 = vadd.f32 %v1008, %v1024
    %v1057 = vadd.f32 %v1009, %v1025
    %v1058 = vadd.f32 %v1010, %v1026
    %v1059 = vadd.f32 %v1011, %v1027
    %v1060 = vmul.f32 %v1044, %v819
    %v1061 = vmul.f32 %v1045, %v819
    %v1062 = vmul.f32 %v1046, %v819
    %v1063 = vmul.f32 %v1047, %v819
    %v1064 = vmul.f32 %v1048, %v819
    %v1065 = vmul.f32 %v1049, %v819
    %v1066 = vmul.f32 %v1050, %v819
    %v1067 = vmul.f32 %v1051, %v819
    %v1068 = vmul.f32 %v1052, %v819
    %v1069 = vmul.f32 %v1053, %v819
    %v1070 = vmul.f32 %v1054, %v819
    %v1071 = vmul.f32 %v1055, %v819
    %v1072 = vmul.f32 %v1056, %v819
    %v1073 = vmul.f32 %v1057, %v819
    %v1074 = vmul.f32 %v1058, %v819
    %v1075 = vmul.f32 %v1059, %v819
    %v1076 = vrot.slane %v185, 4
    %v1077 = vrot.slane %v189, 4
    %v1078 = vrot.slane %v195, 4
    %v1079 = vrot.slane %v199, 4
    %v1080 = vrot.slane %v205, 4
    %v1081 = vrot.slane %v209, 4
    %v1082 = vrot.slane %v215, 4
    %v1083 = vrot.slane %v219, 4
    %v1084 = vrot.slane %v225, 4
    %v1085 = vrot.slane %v229, 4
    %v1086 = vrot.slane %v235, 4
    %v1087 = vrot.slane %v239, 4
    %v1088 = vrot.slane %v245, 4
    %v1089 = vrot.slane %v249, 4
    %v1090 = vrot.slane %v255, 4
    %v1091 = vrot.slane %v259, 4
    %v1108 = vadd.f32 %v1060, %v1076
    %v1109 = vadd.f32 %v1061, %v1077
    %v1110 = vadd.f32 %v1062, %v1078
    %v1111 = vadd.f32 %v1063, %v1079
    %v1112 = vadd.f32 %v1064, %v1080
    %v1113 = vadd.f32 %v1065, %v1081
    %v1114 = vadd.f32 %v1066, %v1082
    %v1115 = vadd.f32 %v1067, %v1083
    %v1116 = vadd.f32 %v1068, %v1084
    %v1117 = vadd.f32 %v1069, %v1085
    %v1118 = vadd.f32 %v1070, %v1086
    %v1119 = vadd.f32 %v1071, %v1087
    %v1120 = vadd.f32 %v1072, %v1088
    %v1121 = vadd.f32 %v1073, %v1089
    %v1122 = vadd.f32 %v1074, %v1090
    %v1123 = vadd.f32 %v1075, %v1091
    %v1124 = vmul.f32 %v1108, %v819
    %v1125 = vmul.f32 %v1109, %v819
    %v1126 = vmul.f32 %v1110, %v819
    %v1127 = vmul.f32 %v1111, %v819
    %v1128 = vmul.f32 %v1112, %v819
    %v1129 = vmul.f32 %v1113, %v819
    %v1130 = vmul.f32 %v1114, %v819
    %v1131 = vmul.f32 %v1115, %v819
    %v1132 = vmul.f32 %v1116, %v819
    %v1133 = vmul.f32 %v1117, %v819
    %v1134 = vmul.f32 %v1118, %v819
    %v1135 = vmul.f32 %v1119, %v819
    %v1136 = vmul.f32 %v1120, %v819
    %v1137 = vmul.f32 %v1121, %v819
    %v1138 = vmul.f32 %v1122, %v819
    %v1139 = vmul.f32 %v1123, %v819
    %v1140 = vrot.slane %v185, 5
    %v1141 = vrot.slane %v189, 5
    %v1142 = vrot.slane %v195, 5
    %v1143 = vrot.slane %v199, 5
    %v1144 = vrot.slane %v205, 5
    %v1145 = vrot.slane %v209, 5
    %v1146 = vrot.slane %v215, 5
    %v1147 = vrot.slane %v219, 5
    %v1148 = vrot.slane %v225, 5
    %v1149 = vrot.slane %v229, 5
    %v1150 = vrot.slane %v235, 5
    %v1151 = vrot.slane %v239, 5
    %v1152 = vrot.slane %v245, 5
    %v1153 = vrot.slane %v249, 5
    %v1154 = vrot.slane %v255, 5
    %v1155 = vrot.slane %v259, 5
    %v1172 = vadd.f32 %v1124, %v1140
    %v1173 = vadd.f32 %v1125, %v1141
    %v1174 = vadd.f32 %v1126, %v1142
    %v1175 = vadd.f32 %v1127, %v1143
    %v1176 = vadd.f32 %v1128, %v1144
    %v1177 = vadd.f32 %v1129, %v1145
    %v1178 = vadd.f32 %v1130, %v1146
    %v1179 = vadd.f32 %v1131, %v1147
    %v1180 = vadd.f32 %v1132, %v1148
    %v1181 = vadd.f32 %v1133, %v1149
    %v1182 = vadd.f32 %v1134, %v1150
    %v1183 = vadd.f32 %v1135, %v1151
    %v1184 = vadd.f32 %v1136, %v1152
    %v1185 = vadd.f32 %v1137, %v1153
    %v1186 = vadd.f32 %v1138, %v1154
    %v1187 = vadd.f32 %v1139, %v1155
    %v1188 = vmul.f32 %v1172, %v819
    %v1189 = vmul.f32 %v1173, %v819
    %v1190 = vmul.f32 %v1174, %v819
    %v1191 = vmul.f32 %v1175, %v819
    %v1192 = vmul.f32 %v1176, %v819
    %v1193 = vmul.f32 %v1177, %v819
    %v1194 = vmul.f32 %v1178, %v819
    %v1195 = vmul.f32 %v1179, %v819
    %v1196 = vmul.f32 %v1180, %v819
    %v1197 = vmul.f32 %v1181, %v819
    %v1198 = vmul.f32 %v1182, %v819
    %v1199 = vmul.f32 %v1183, %v819
    %v1200 = vmul.f32 %v1184, %v819
    %v1201 = vmul.f32 %v1185, %v819
    %v1202 = vmul.f32 %v1186, %v819
    %v1203 = vmul.f32 %v1187, %v819
    %v1204 = vrot.slane %v185, 6
    %v1205 = vrot.slane %v189, 6
    %v1206 = vrot.slane %v195, 6
    %v1207 = vrot.slane %v199, 6
    %v1208 = vrot.slane %v205, 6
    %v1209 = vrot.slane %v209, 6
    %v1210 = vrot.slane %v215, 6
    %v1211 = vrot.slane %v219, 6
    %v1212 = vrot.slane %v225, 6
    %v1213 = vrot.slane %v229, 6
    %v1214 = vrot.slane %v235, 6
    %v1215 = vrot.slane %v239, 6
    %v1216 = vrot.slane %v245, 6
    %v1217 = vrot.slane %v249, 6
    %v1218 = vrot.slane %v255, 6
    %v1219 = vrot.slane %v259, 6
    %v1236 = vadd.f32 %v1188, %v1204
    %v1237 = vadd.f32 %v1189, %v1205
    %v1238 = vadd.f32 %v1190, %v1206
    %v1239 = vadd.f32 %v1191, %v1207
    %v1240 = vadd.f32 %v1192, %v1208
    %v1241 = vadd.f32 %v1193, %v1209
    %v1242 = vadd.f32 %v1194, %v1210
    %v1243 = vadd.f32 %v1195, %v1211
    %v1244 = vadd.f32 %v1196, %v1212
    %v1245 = vadd.f32 %v1197, %v1213
    %v1246 = vadd.f32 %v1198, %v1214
    %v1247 = vadd.f32 %v1199, %v1215
    %v1248 = vadd.f32 %v1200, %v1216
    %v1249 = vadd.f32 %v1201, %v1217
    %v1250 = vadd.f32 %v1202, %v1218
    %v1251 = vadd.f32 %v1203, %v1219
    %v1252 = vmul.f32 %v1236, %v819
    %v1253 = vmul.f32 %v1237, %v819
    %v1254 = vmul.f32 %v1238, %v819
    %v1255 = vmul.f32 %v1239, %v819
    %v1256 = vmul.f32 %v1240, %v819
    %v1257 = vmul.f32 %v1241, %v819
    %v1258 = vmul.f32 %v1242, %v819
    %v1259 = vmul.f32 %v1243, %v819
    %v1260 = vmul.f32 %v1244, %v819
    %v1261 = vmul.f32 %v1245, %v819
    %v1262 = vmul.f32 %v1246, %v819
    %v1263 = vmul.f32 %v1247, %v819
    %v1264 = vmul.f32 %v1248, %v819
    %v1265 = vmul.f32 %v1249, %v819
    %v1266 = vmul.f32 %v1250, %v819
    %v1267 = vmul.f32 %v1251, %v819
    %v1268 = vrot.slane %v185, 7
    %v1269 = vrot.slane %v189, 7
    %v1270 = vrot.slane %v195, 7
    %v1271 = vrot.slane %v199, 7
    %v1272 = vrot.slane %v205, 7
    %v1273 = vrot.slane %v209, 7
    %v1274 = vrot.slane %v215, 7
    %v1275 = vrot.slane %v219, 7
    %v1276 = vrot.slane %v225, 7
    %v1277 = vrot.slane %v229, 7
    %v1278 = vrot.slane %v235, 7
    %v1279 = vrot.slane %v239, 7
    %v1280 = vrot.slane %v245, 7
    %v1281 = vrot.slane %v249, 7
    %v1282 = vrot.slane %v255, 7
    %v1283 = vrot.slane %v259, 7
    %v1300 = vadd.f32 %v1252, %v1268
    %v1301 = vadd.f32 %v1253, %v1269
    %v1302 = vadd.f32 %v1254, %v1270
    %v1303 = vadd.f32 %v1255, %v1271
    %v1304 = vadd.f32 %v1256, %v1272
    %v1305 = vadd.f32 %v1257, %v1273
    %v1306 = vadd.f32 %v1258, %v1274
    %v1307 = vadd.f32 %v1259, %v1275
    %v1308 = vadd.f32 %v1260, %v1276
    %v1309 = vadd.f32 %v1261, %v1277
    %v1310 = vadd.f32 %v1262, %v1278
    %v1311 = vadd.f32 %v1263, %v1279
    %v1312 = vadd.f32 %v1264, %v1280
    %v1313 = vadd.f32 %v1265, %v1281
    %v1314 = vadd.f32 %v1266, %v1282
    %v1315 = vadd.f32 %v1267, %v1283
    %v1332 = vrot.slane %v837, 7
    %vm1333 = vcmask 1041409
    %v1334 = vsel %vm1333, %v1332, %v836
    %v1335 = vrot.slane %v838, 6
    %vm1336 = vcmask 1042434
    %v1337 = vsel %vm1336, %v1335, %v1334
    %v1338 = vrot.slane %v839, 5
    %vm1339 = vcmask 1043459
    %v1340 = vsel %vm1339, %v1338, %v1337
    %v1341 = vrot.slane %v840, 4
    %vm1342 = vcmask 1044484
    %v1343 = vsel %vm1342, %v1341, %v1340
    %v1344 = vrot.slane %v841, 3
    %vm1345 = vcmask 1045509
    %v1346 = vsel %vm1345, %v1344, %v1343
    %v1347 = vrot.slane %v842, 2
    %vm1348 = vcmask 1046534
    %v1349 = vsel %vm1348, %v1347, %v1346
    %v1350 = vrot.slane %v843, 1
    %vm1351 = vcmask 1047559
    %v1352 = vsel %vm1351, %v1350, %v1349
    %v1353 = vrot.slane %v845, 7
    %v1354 = vsel %vm1333, %v1353, %v844
    %v1355 = vrot.slane %v846, 6
    %v1356 = vsel %vm1336, %v1355, %v1354
    %v1357 = vrot.slane %v847, 5
    %v1358 = vsel %vm1339, %v1357, %v1356
    %v1359 = vrot.slane %v848, 4
    %v1360 = vsel %vm1342, %v1359, %v1358
    %v1361 = vrot.slane %v849, 3
    %v1362 = vsel %vm1345, %v1361, %v1360
    %v1363 = vrot.slane %v850, 2
    %v1364 = vsel %vm1348, %v1363, %v1362
    %v1365 = vrot.slane %v851, 1
    %v1366 = vsel %vm1351, %v1365, %v1364
    %v1385 = vrot.slane %v917, 7
    %v1386 = vsel %vm1333, %v1385, %v916
    %v1387 = vrot.slane %v918, 6
    %v1388 = vsel %vm1336, %v1387, %v1386
    %v1389 = vrot.slane %v919, 5
    %v1390 = vsel %vm1339, %v1389, %v1388
    %v1391 = vrot.slane %v920, 4
    %v1392 = vsel %vm1342, %v1391, %v1390
    %v1393 = vrot.slane %v921, 3
    %v1394 = vsel %vm1345, %v1393, %v1392
    %v1395 = vrot.slane %v922, 2
    %v1396 = vsel %vm1348, %v1395, %v1394
    %v1397 = vrot.slane %v923, 1
    %v1398 = vsel %vm1351, %v1397, %v1396
    %v1399 = vrot.slane %v925, 7
    %v1400 = vsel %vm1333, %v1399, %v924
    %v1401 = vrot.slane %v926, 6
    %v1402 = vsel %vm1336, %v1401, %v1400
    %v1403 = vrot.slane %v927, 5
    %v1404 = vsel %vm1339, %v1403, %v1402
    %v1405 = vrot.slane %v928, 4
    %v1406 = vsel %vm1342, %v1405, %v1404
    %v1407 = vrot.slane %v929, 3
    %v1408 = vsel %vm1345, %v1407, %v1406
    %v1409 = vrot.slane %v930, 2
    %v1410 = vsel %vm1348, %v1409, %v1408
    %v1411 = vrot.slane %v931, 1
    %v1412 = vsel %vm1351, %v1411, %v1410
    %v1431 = vrot.slane %v981, 7
    %v1432 = vsel %vm1333, %v1431, %v980
    %v1433 = vrot.slane %v982, 6
    %v1434 = vsel %vm1336, %v1433, %v1432
    %v1435 = vrot.slane %v983, 5
    %v1436 = vsel %vm1339, %v1435, %v1434
    %v1437 = vrot.slane %v984, 4
    %v1438 = vsel %vm1342, %v1437, %v1436
    %v1439 = vrot.slane %v985, 3
    %v1440 = vsel %vm1345, %v1439, %v1438
    %v1441 = vrot.slane %v986, 2
    %v1442 = vsel %vm1348, %v1441, %v1440
    %v1443 = vrot.slane %v987, 1
    %v1444 = vsel %vm1351, %v1443, %v1442
    %v1445 = vrot.slane %v989, 7
    %v1446 = vsel %vm1333, %v1445, %v988
    %v1447 = vrot.slane %v990, 6
    %v1448 = vsel %vm1336, %v1447, %v1446
    %v1449 = vrot.slane %v991, 5
    %v1450 = vsel %vm1339, %v1449, %v1448
    %v1451 = vrot.slane %v992, 4
    %v1452 = vsel %vm1342, %v1451, %v1450
    %v1453 = vrot.slane %v993, 3
    %v1454 = vsel %vm1345, %v1453, %v1452
    %v1455 = vrot.slane %v994, 2
    %v1456 = vsel %vm1348, %v1455, %v1454
    %v1457 = vrot.slane %v995, 1
    %v1458 = vsel %vm1351, %v1457, %v1456
    %v1477 = vrot.slane %v1045, 7
    %v1478 = vsel %vm1333, %v1477, %v1044
    %v1479 = vrot.slane %v1046, 6
    %v1480 = vsel %vm1336, %v1479, %v1478
    %v1481 = vrot.slane %v1047, 5
    %v1482 = vsel %vm1339, %v1481, %v1480
    %v1483 = vrot.slane %v1048, 4
    %v1484 = vsel %vm1342, %v1483, %v1482
    %v1485 = vrot.slane %v1049, 3
    %v1486 = vsel %vm1345, %v1485, %v1484
    %v1487 = vrot.slane %v1050, 2
    %v1488 = vsel %vm1348, %v1487, %v1486
    %v1489 = vrot.slane %v1051, 1
    %v1490 = vsel %vm1351, %v1489, %v1488
    %v1491 = vrot.slane %v1053, 7
    %v1492 = vsel %vm1333, %v1491, %v1052
    %v1493 = vrot.slane %v1054, 6
    %v1494 = vsel %vm1336, %v1493, %v1492
    %v1495 = vrot.slane %v1055, 5
    %v1496 = vsel %vm1339, %v1495, %v1494
    %v1497 = vrot.slane %v1056, 4
    %v1498 = vsel %vm1342, %v1497, %v1496
    %v1499 = vrot.slane %v1057, 3
    %v1500 = vsel %vm1345, %v1499, %v1498
    %v1501 = vrot.slane %v1058, 2
    %v1502 = vsel %vm1348, %v1501, %v1500
    %v1503 = vrot.slane %v1059, 1
    %v1504 = vsel %vm1351, %v1503, %v1502
    %v1523 = vrot.slane %v1109, 7
    %v1524 = vsel %vm1333, %v1523, %v1108
    %v1525 = vrot.slane %v1110, 6
    %v1526 = vsel %vm1336, %v1525, %v1524
    %v1527 = vrot.slane %v1111, 5
    %v1528 = vsel %vm1339, %v1527, %v1526
    %v1529 = vrot.slane %v1112, 4
    %v1530 = vsel %vm1342, %v1529, %v1528
    %v1531 = vrot.slane %v1113, 3
    %v1532 = vsel %vm1345, %v1531, %v1530
    %v1533 = vrot.slane %v1114, 2
    %v1534 = vsel %vm1348, %v1533, %v1532
    %v1535 = vrot.slane %v1115, 1
    %v1536 = vsel %vm1351, %v1535, %v1534
    %v1537 = vrot.slane %v1117, 7
    %v1538 = vsel %vm1333, %v1537, %v1116
    %v1539 = vrot.slane %v1118, 6
    %v1540 = vsel %vm1336, %v1539, %v1538
    %v1541 = vrot.slane %v1119, 5
    %v1542 = vsel %vm1339, %v1541, %v1540
    %v1543 = vrot.slane %v1120, 4
    %v1544 = vsel %vm1342, %v1543, %v1542
    %v1545 = vrot.slane %v1121, 3
    %v1546 = vsel %vm1345, %v1545, %v1544
    %v1547 = vrot.slane %v1122, 2
    %v1548 = vsel %vm1348, %v1547, %v1546
    %v1549 = vrot.slane %v1123, 1
    %v1550 = vsel %vm1351, %v1549, %v1548
    %v1569 = vrot.slane %v1173, 7
    %v1570 = vsel %vm1333, %v1569, %v1172
    %v1571 = vrot.slane %v1174, 6
    %v1572 = vsel %vm1336, %v1571, %v1570
    %v1573 = vrot.slane %v1175, 5
    %v1574 = vsel %vm1339, %v1573, %v1572
    %v1575 = vrot.slane %v1176, 4
    %v1576 = vsel %vm1342, %v1575, %v1574
    %v1577 = vrot.slane %v1177, 3
    %v1578 = vsel %vm1345, %v1577, %v1576
    %v1579 = vrot.slane %v1178, 2
    %v1580 = vsel %vm1348, %v1579, %v1578
    %v1581 = vrot.slane %v1179, 1
    %v1582 = vsel %vm1351, %v1581, %v1580
    %v1583 = vrot.slane %v1181, 7
    %v1584 = vsel %vm1333, %v1583, %v1180
    %v1585 = vrot.slane %v1182, 6
    %v1586 = vsel %vm1336, %v1585, %v1584
    %v1587 = vrot.slane %v1183, 5
    %v1588 = vsel %vm1339, %v1587, %v1586
    %v1589 = vrot.slane %v1184, 4
    %v1590 = vsel %vm1342, %v1589, %v1588
    %v1591 = vrot.slane %v1185, 3
    %v1592 = vsel %vm1345, %v1591, %v1590
    %v1593 = vrot.slane %v1186, 2
    %v1594 = vsel %vm1348, %v1593, %v1592
    %v1595 = vrot.slane %v1187, 1
    %v1596 = vsel %vm1351, %v1595, %v1594
    %v1615 = vrot.slane %v1237, 7
    %v1616 = vsel %vm1333, %v1615, %v1236
    %v1617 = vrot.slane %v1238, 6
    %v1618 = vsel %vm1336, %v1617, %v1616
    %v1619 = vrot.slane %v1239, 5
    %v1620 = vsel %vm1339, %v1619, %v1618
    %v1621 = vrot.slane %v1240, 4
    %v1622 = vsel %vm1342, %v1621, %v1620
    %v1623 = vrot.slane %v1241, 3
    %v1624 = vsel %vm1345, %v1623, %v1622
    %v1625 = vrot.slane %v1242, 2
    %v1626 = vsel %vm1348, %v1625, %v1624
    %v1627 = vrot.slane %v1243, 1
    %v1628 = vsel %vm1351, %v1627, %v1626
    %v1629 = vrot.slane %v1245, 7
    %v1630 = vsel %vm1333, %v1629, %v1244
    %v1631 = vrot.slane %v1246, 6
    %v1632 = vsel %vm1336, %v1631, %v1630
    %v1633 = vrot.slane %v1247, 5
    %v1634 = vsel %vm1339, %v1633, %v1632
    %v1635 = vrot.slane %v1248, 4
    %v1636 = vsel %vm1342, %v1635, %v1634
    %v1637 = vrot.slane %v1249, 3
    %v1638 = vsel %vm1345, %v1637, %v1636
    %v1639 = vrot.slane %v1250, 2
    %v1640 = vsel %vm1348, %v1639, %v1638
    %v1641 = vrot.slane %v1251, 1
    %v1642 = vsel %vm1351, %v1641, %v1640
    %v1661 = vrot.slane %v1301, 7
    %v1662 = vsel %vm1333, %v1661, %v1300
    %v1663 = vrot.slane %v1302, 6
    %v1664 = vsel %vm1336, %v1663, %v1662
    %v1665 = vrot.slane %v1303, 5
    %v1666 = vsel %vm1339, %v1665, %v1664
    %v1667 = vrot.slane %v1304, 4
    %v1668 = vsel %vm1342, %v1667, %v1666
    %v1669 = vrot.slane %v1305, 3
    %v1670 = vsel %vm1345, %v1669, %v1668
    %v1671 = vrot.slane %v1306, 2
    %v1672 = vsel %vm1348, %v1671, %v1670
    %v1673 = vrot.slane %v1307, 1
    %v1674 = vsel %vm1351, %v1673, %v1672
    %v1675 = vrot.slane %v1309, 7
    %v1676 = vsel %vm1333, %v1675, %v1308
    %v1677 = vrot.slane %v1310, 6
    %v1678 = vsel %vm1336, %v1677, %v1676
    %v1679 = vrot.slane %v1311, 5
    %v1680 = vsel %vm1339, %v1679, %v1678
    %v1681 = vrot.slane %v1312, 4
    %v1682 = vsel %vm1342, %v1681, %v1680
    %v1683 = vrot.slane %v1313, 3
    %v1684 = vsel %vm1345, %v1683, %v1682
    %v1685 = vrot.slane %v1314, 2
    %v1686 = vsel %vm1348, %v1685, %v1684
    %v1687 = vrot.slane %v1315, 1
    %v1688 = vsel %vm1351, %v1687, %v1686
    %v1691 = vld [vmem:[%s4] sm:$0xff]
    %v1692 = vld [vmem:[%s4 + $0x8] sm:$0xff]
    %v1693 = vld [vmem:[%s4 + $0x10] sm:$0xff]
    %v1694 = vld [vmem:[%s4 + $0x18] sm:$0xff]
    %v1695 = vld [vmem:[#allocation5] sm:$0xf]
    %v1696 = vld [vmem:[#allocation5 + $0x4] sm:$0xf]
    %v1697 = vpack.c.bf16 %v1366, %v1352
    %v1698 = vpack.c.bf16 %v1412, %v1398
    %v1699 = vpack.c.bf16 %v1458, %v1444
    %v1700 = vpack.c.bf16 %v1504, %v1490
    %v1701 = vpack.c.bf16 %v1550, %v1536
    %v1702 = vpack.c.bf16 %v1596, %v1582
    %v1703 = vpack.c.bf16 %v1642, %v1628
    %v1704 = vpack.c.bf16 %v1688, %v1674
    %v1705 = vlaneseq
    %v1706 = vshrl.u32 %v1705, 7
    %v1707 = vsub.s32 6, %v1706
    %v1708 = vrot.slane %v53, %v1707
    %v1711 = vunpack.c.l.b16 %v1695
    %v1712 = vunpack.c.l.b16 %v1696
    %v1713 = vpack.c.b16 %v1712, %v1711
    %v1716 = vsel %vm123, %v1697, 0
    %v1719 = vsel %vm123, %v1698, 0
    %v1722 = vsel %vm123, %v1699, 0
    %v1725 = vsel %vm123, %v1700, 0
    %v1728 = vsel %vm123, %v1701, 0
    %v1731 = vsel %vm123, %v1702, 0
    %v1734 = vsel %vm123, %v1703, 0
    %v1737 = vsel %vm123, %v1704, 0
    %1739 = vmatprep.subr.bf16.mxu0 0
    %1740 = vmatpush1.bf16.msra.mxu0 %v1713
    %1741 = vmatprep.subr.bf16.mxu0 0
    %1742 = vmatpush1.bf16.msra.mxu0 0
    %1743 = vmatprep.subr.bf16.mxu0 0
    %1744 = vmatpush1.bf16.msra.mxu0 0
    %1745 = vmatprep.subr.bf16.mxu0 0
    %1746 = vmatpush1.bf16.msra.mxu0 0
    %1747 = vmatprep.subr.bf16.mxu0 0
    %1748 = vmatpush1.bf16.msra.mxu0 0
    %1749 = vmatprep.subr.bf16.mxu0 0
    %1750 = vmatpush1.bf16.msra.mxu0 0
    %1751 = vmatprep.subr.bf16.mxu0 0
    %1752 = vmatpush1.bf16.msra.mxu0 0
    %1753 = vmatprep.subr.bf16.mxu0 0
    %1754 = vmatpush1.bf16.msra.mxu0 0
    %1755 = vmatprep.subr.bf16.mxu0 0
    %1756 = vmatpush1.bf16.msra.mxu0 0
    %1757 = vmatprep.subr.bf16.mxu0 0
    %1758 = vmatpush1.bf16.msra.mxu0 0
    %1759 = vmatprep.subr.bf16.mxu0 0
    %1760 = vmatpush1.bf16.msra.mxu0 0
    %1761 = vmatprep.subr.bf16.mxu0 0
    %1762 = vmatpush1.bf16.msra.mxu0 0
    %1763 = vmatprep.subr.bf16.mxu0 0
    %1764 = vmatpush1.bf16.msra.mxu0 0
    %1765 = vmatprep.subr.bf16.mxu0 0
    %1766 = vmatpush1.bf16.msra.mxu0 0
    %1767 = vmatprep.subr.bf16.mxu0 0
    %1768 = vmatpush1.bf16.msra.mxu0 0
    %1769 = vmatprep.subr.bf16.mxu0 0
    %1770 = vmatpush1.bf16.msra.mxu0 0
    %1771 = vmatprep.mubr.bf16.mxu0 0
    %1772 = vmatmul.mubr.bf16.gmra.mrb[0].mxu0 %v1716
    %v1773 = vpop.f32.mrb[0].mxu0
    %v1774 = vadd.f32 %v1708, %v1773
    %v1775 = vpop.f32.mrb[0].mxu0
    %v1776 = vpop.f32.mrb[0].mxu0
    %v1777 = vadd.f32 %v1708, %v1776
    %v1778 = vpop.f32.mrb[0].mxu0
    %1779 = vmatprep.mubr.bf16.mxu0 0
    %1780 = vmatmul.mubr.bf16.gmra.mrb[0].mxu0 %v1719
    %v1781 = vpop.f32.mrb[0].mxu0
    %v1782 = vadd.f32 %v1708, %v1781
    %v1783 = vpop.f32.mrb[0].mxu0
    %v1784 = vpop.f32.mrb[0].mxu0
    %v1785 = vadd.f32 %v1708, %v1784
    %v1786 = vpop.f32.mrb[0].mxu0
    %1787 = vmatprep.mubr.bf16.mxu0 0
    %1788 = vmatmul.mubr.bf16.gmra.mrb[0].mxu0 %v1722
    %v1789 = vpop.f32.mrb[0].mxu0
    %v1790 = vadd.f32 %v1708, %v1789
    %v1791 = vpop.f32.mrb[0].mxu0
    %v1792 = vpop.f32.mrb[0].mxu0
    %v1793 = vadd.f32 %v1708, %v1792
    %v1794 = vpop.f32.mrb[0].mxu0
    %1795 = vmatprep.mubr.bf16.mxu0 0
    %1796 = vmatmul.mubr.bf16.gmra.mrb[0].mxu0 %v1725
    %v1797 = vpop.f32.mrb[0].mxu0
    %v1798 = vadd.f32 %v1708, %v1797
    %v1799 = vpop.f32.mrb[0].mxu0
    %v1800 = vpop.f32.mrb[0].mxu0
    %v1801 = vadd.f32 %v1708, %v1800
    %v1802 = vpop.f32.mrb[0].mxu0
    %1803 = vmatprep.mubr.bf16.mxu0 0
    %1804 = vmatmul.mubr.bf16.gmra.mrb[0].mxu0 %v1728
    %v1805 = vpop.f32.mrb[0].mxu0
    %v1806 = vadd.f32 %v1708, %v1805
    %v1807 = vpop.f32.mrb[0].mxu0
    %v1808 = vpop.f32.mrb[0].mxu0
    %v1809 = vadd.f32 %v1708, %v1808
    %v1810 = vpop.f32.mrb[0].mxu0
    %1811 = vmatprep.mubr.bf16.mxu0 0
    %1812 = vmatmul.mubr.bf16.gmra.mrb[0].mxu0 %v1731
    %v1813 = vpop.f32.mrb[0].mxu0
    %v1814 = vadd.f32 %v1708, %v1813
    %v1815 = vpop.f32.mrb[0].mxu0
    %v1816 = vpop.f32.mrb[0].mxu0
    %v1817 = vadd.f32 %v1708, %v1816
    %v1818 = vpop.f32.mrb[0].mxu0
    %1819 = vmatprep.mubr.bf16.mxu0 0
    %1820 = vmatmul.mubr.bf16.gmra.mrb[0].mxu0 %v1734
    %v1821 = vpop.f32.mrb[0].mxu0
    %v1822 = vadd.f32 %v1708, %v1821
    %v1823 = vpop.f32.mrb[0].mxu0
    %v1824 = vpop.f32.mrb[0].mxu0
    %v1825 = vadd.f32 %v1708, %v1824
    %v1826 = vpop.f32.mrb[0].mxu0
    %1827 = vmatprep.mubr.bf16.mxu0 0
    %1828 = vmatmul.mubr.bf16.gmra.mrb[0].mxu0 %v1737
    %v1829 = vpop.f32.mrb[0].mxu0
    %v1830 = vadd.f32 %v1708, %v1829
    %v1831 = vpop.f32.mrb[0].mxu0
    %v1832 = vpop.f32.mrb[0].mxu0
    %v1833 = vadd.f32 %v1708, %v1832
    %v1834 = vpop.f32.mrb[0].mxu0
    %1835 = vdwg.mxu0
    %v1836 = vmax.f32 %v1774, 0.0
    %v1837 = vmax.f32 %v1777, 0.0
    %v1838 = vmax.f32 %v1782, 0.0
    %v1839 = vmax.f32 %v1785, 0.0
    %v1840 = vmax.f32 %v1790, 0.0
    %v1841 = vmax.f32 %v1793, 0.0
    %v1842 = vmax.f32 %v1798, 0.0
    %v1843 = vmax.f32 %v1801, 0.0
    %v1844 = vmax.f32 %v1806, 0.0
    %v1845 = vmax.f32 %v1809, 0.0
    %v1846 = vmax.f32 %v1814, 0.0
    %v1847 = vmax.f32 %v1817, 0.0
    %v1848 = vmax.f32 %v1822, 0.0
    %v1849 = vmax.f32 %v1825, 0.0
    %v1850 = vmax.f32 %v1830, 0.0
    %v1851 = vmax.f32 %v1833, 0.0
    %v1852 = vpack.c.bf16 %v1837, %v1836
    %v1853 = vpack.c.bf16 %v1839, %v1838
    %v1854 = vpack.c.bf16 %v1841, %v1840
    %v1855 = vpack.c.bf16 %v1843, %v1842
    %v1856 = vpack.c.bf16 %v1845, %v1844
    %v1857 = vpack.c.bf16 %v1847, %v1846
    %v1858 = vpack.c.bf16 %v1849, %v1848
    %v1859 = vpack.c.bf16 %v1851, %v1850
    %v1860 = vlaneseq
    %v1861 = vshrl.u32 %v1860, 7
    %v1862 = vsub.s32 7, %v1861
    %v1863 = vrot.slane %v53, %v1862
    %v1868 = vunpack.c.l.b16 %v1691
    %v1869 = vunpack.c.l.b16 %v1692
    %v1870 = vunpack.c.l.b16 %v1693
    %v1871 = vunpack.c.l.b16 %v1694
    %v1872 = vpack.c.b16 %v1869, %v1868
    %v1873 = vpack.c.b16 %v1871, %v1870
    %v1877 = vsel %vm325, %v1852, 0
    %v1880 = vsel %vm325, %v1853, 0
    %v1883 = vsel %vm325, %v1854, 0
    %v1886 = vsel %vm325, %v1855, 0
    %v1889 = vsel %vm325, %v1856, 0
    %v1892 = vsel %vm325, %v1857, 0
    %v1895 = vsel %vm325, %v1858, 0
    %v1898 = vsel %vm325, %v1859, 0
    %1900 = vmatprep.subr.bf16.mxu0 0
    %1901 = vmatpush1.bf16.msra.mxu0 %v1872
    %1902 = vmatprep.subr.bf16.mxu0 0
    %1903 = vmatpush1.bf16.msra.mxu0 %v1873
    %1904 = vmatprep.subr.bf16.mxu0 0
    %1905 = vmatpush1.bf16.msra.mxu0 0
    %1906 = vmatprep.subr.bf16.mxu0 0
    %1907 = vmatpush1.bf16.msra.mxu0 0
    %1908 = vmatprep.subr.bf16.mxu0 0
    %1909 = vmatpush1.bf16.msra.mxu0 0
    %1910 = vmatprep.subr.bf16.mxu0 0
    %1911 = vmatpush1.bf16.msra.mxu0 0
    %1912 = vmatprep.subr.bf16.mxu0 0
    %1913 = vmatpush1.bf16.msra.mxu0 0
    %1914 = vmatprep.subr.bf16.mxu0 0
    %1915 = vmatpush1.bf16.msra.mxu0 0
    %1916 = vmatprep.subr.bf16.mxu0 0
    %1917 = vmatpush1.bf16.msra.mxu0 0
    %1918 = vmatprep.subr.bf16.mxu0 0
    %1919 = vmatpush1.bf16.msra.mxu0 0
    %1920 = vmatprep.subr.bf16.mxu0 0
    %1921 = vmatpush1.bf16.msra.mxu0 0
    %1922 = vmatprep.subr.bf16.mxu0 0
    %1923 = vmatpush1.bf16.msra.mxu0 0
    %1924 = vmatprep.subr.bf16.mxu0 0
    %1925 = vmatpush1.bf16.msra.mxu0 0
    %1926 = vmatprep.subr.bf16.mxu0 0
    %1927 = vmatpush1.bf16.msra.mxu0 0
    %1928 = vmatprep.subr.bf16.mxu0 0
    %1929 = vmatpush1.bf16.msra.mxu0 0
    %1930 = vmatprep.subr.bf16.mxu0 0
    %1931 = vmatpush1.bf16.msra.mxu0 0
    %1932 = vmatprep.mubr.bf16.mxu0 0
    %1933 = vmatmul.mubr.bf16.gmra.mrb[0].mxu0 %v1877
    %v1934 = vpop.f32.mrb[0].mxu0
    %v1935 = vadd.f32 %v1863, %v1934
    %v1936 = vpop.f32.mrb[0].mxu0
    %v1937 = vpop.f32.mrb[0].mxu0
    %v1938 = vadd.f32 %v1863, %v1937
    %v1939 = vpop.f32.mrb[0].mxu0
    %1940 = vmatprep.mubr.bf16.mxu0 0
    %1941 = vmatmul.mubr.bf16.gmra.mrb[0].mxu0 %v1880
    %v1942 = vpop.f32.mrb[0].mxu0
    %v1943 = vadd.f32 %v1863, %v1942
    %v1944 = vpop.f32.mrb[0].mxu0
    %v1945 = vpop.f32.mrb[0].mxu0
    %v1946 = vadd.f32 %v1863, %v1945
    %v1947 = vpop.f32.mrb[0].mxu0
    %1948 = vmatprep.mubr.bf16.mxu0 0
    %1949 = vmatmul.mubr.bf16.gmra.mrb[0].mxu0 %v1883
    %v1950 = vpop.f32.mrb[0].mxu0
    %v1951 = vadd.f32 %v1863, %v1950
    %v1952 = vpop.f32.mrb[0].mxu0
    %v1953 = vpop.f32.mrb[0].mxu0
    %v1954 = vadd.f32 %v1863, %v1953
    %v1955 = vpop.f32.mrb[0].mxu0
    %1956 = vmatprep.mubr.bf16.mxu0 0
    %1957 = vmatmul.mubr.bf16.gmra.mrb[0].mxu0 %v1886
    %v1958 = vpop.f32.mrb[0].mxu0
    %v1959 = vadd.f32 %v1863, %v1958
    %v1960 = vpop.f32.mrb[0].mxu0
    %v1961 = vpop.f32.mrb[0].mxu0
    %v1962 = vadd.f32 %v1863, %v1961
    %v1963 = vpop.f32.mrb[0].mxu0
    %1964 = vmatprep.mubr.bf16.mxu0 0
    %1965 = vmatmul.mubr.bf16.gmra.mrb[0].mxu0 %v1889
    %v1966 = vpop.f32.mrb[0].mxu0
    %v1967 = vadd.f32 %v1863, %v1966
    %v1968 = vpop.f32.mrb[0].mxu0
    %v1969 = vpop.f32.mrb[0].mxu0
    %v1970 = vadd.f32 %v1863, %v1969
    %v1971 = vpop.f32.mrb[0].mxu0
    %1972 = vmatprep.mubr.bf16.mxu0 0
    %1973 = vmatmul.mubr.bf16.gmra.mrb[0].mxu0 %v1892
    %v1974 = vpop.f32.mrb[0].mxu0
    %v1975 = vadd.f32 %v1863, %v1974
    %v1976 = vpop.f32.mrb[0].mxu0
    %v1977 = vpop.f32.mrb[0].mxu0
    %v1978 = vadd.f32 %v1863, %v1977
    %v1979 = vpop.f32.mrb[0].mxu0
    %1980 = vmatprep.mubr.bf16.mxu0 0
    %1981 = vmatmul.mubr.bf16.gmra.mrb[0].mxu0 %v1895
    %v1982 = vpop.f32.mrb[0].mxu0
    %v1983 = vadd.f32 %v1863, %v1982
    %v1984 = vpop.f32.mrb[0].mxu0
    %v1985 = vpop.f32.mrb[0].mxu0
    %v1986 = vadd.f32 %v1863, %v1985
    %v1987 = vpop.f32.mrb[0].mxu0
    %1988 = vmatprep.mubr.bf16.mxu0 0
    %1989 = vmatmul.mubr.bf16.gmra.mrb[0].mxu0 %v1898
    %v1990 = vpop.f32.mrb[0].mxu0
    %v1991 = vadd.f32 %v1863, %v1990
    %v1992 = vpop.f32.mrb[0].mxu0
    %v1993 = vpop.f32.mrb[0].mxu0
    %v1994 = vadd.f32 %v1863, %v1993
    %v1995 = vpop.f32.mrb[0].mxu0
    %1996 = vdwg.mxu0
    %v1997 = vmax.f32 %v1935, 0.0
    %v1998 = vmax.f32 %v1938, 0.0
    %v1999 = vmax.f32 %v1943, 0.0
    %v2000 = vmax.f32 %v1946, 0.0
    %v2001 = vmax.f32 %v1951, 0.0
    %v2002 = vmax.f32 %v1954, 0.0
    %v2003 = vmax.f32 %v1959, 0.0
    %v2004 = vmax.f32 %v1962, 0.0
    %v2005 = vmax.f32 %v1967, 0.0
    %v2006 = vmax.f32 %v1970, 0.0
    %v2007 = vmax.f32 %v1975, 0.0
    %v2008 = vmax.f32 %v1978, 0.0
    %v2009 = vmax.f32 %v1983, 0.0
    %v2010 = vmax.f32 %v1986, 0.0
    %v2011 = vmax.f32 %v1991, 0.0
    %v2012 = vmax.f32 %v1994, 0.0
    %v2013 = vpack.c.bf16 %v1998, %v1997
    %v2014 = vpack.c.bf16 %v2000, %v1999
    %v2015 = vpack.c.bf16 %v2002, %v2001
    %v2016 = vpack.c.bf16 %v2004, %v2003
    %v2017 = vpack.c.bf16 %v2006, %v2005
    %v2018 = vpack.c.bf16 %v2008, %v2007
    %v2019 = vpack.c.bf16 %v2010, %v2009
    %v2020 = vpack.c.bf16 %v2012, %v2011
    %v2021 = vlaneseq
    %v2022 = vshrl.u32 %v2021, 7
    %v2023 = vsub.s32 0, %v2022
    %v2024 = vrot.slane %v54, %v2023
    %v2025 = vunpack.c.h.b16 %v1691
    %v2026 = vunpack.c.h.b16 %v1692
    %v2027 = vunpack.c.h.b16 %v1693
    %v2028 = vunpack.c.h.b16 %v1694
    %v2029 = vpack.c.b16 %v2026, %v2025
    %v2030 = vpack.c.b16 %v2028, %v2027
    %v2034 = vsel %vm325, %v2013, 0
    %v2037 = vsel %vm325, %v2014, 0
    %v2040 = vsel %vm325, %v2015, 0
    %v2043 = vsel %vm325, %v2016, 0
    %v2046 = vsel %vm325, %v2017, 0
    %v2049 = vsel %vm325, %v2018, 0
    %v2052 = vsel %vm325, %v2019, 0
    %v2055 = vsel %vm325, %v2020, 0
    %2057 = vmatprep.subr.bf16.mxu0 0
    %2058 = vmatpush1.bf16.msra.mxu0 %v2029
    %2059 = vmatprep.subr.bf16.mxu0 0
    %2060 = vmatpush1.bf16.msra.mxu0 %v2030
    %2061 = vmatprep.subr.bf16.mxu0 0
    %2062 = vmatpush1.bf16.msra.mxu0 0
    %2063 = vmatprep.subr.bf16.mxu0 0
    %2064 = vmatpush1.bf16.msra.mxu0 0
    %2065 = vmatprep.subr.bf16.mxu0 0
    %2066 = vmatpush1.bf16.msra.mxu0 0
    %2067 = vmatprep.subr.bf16.mxu0 0
    %2068 = vmatpush1.bf16.msra.mxu0 0
    %2069 = vmatprep.subr.bf16.mxu0 0
    %2070 = vmatpush1.bf16.msra.mxu0 0
    %2071 = vmatprep.subr.bf16.mxu0 0
    %2072 = vmatpush1.bf16.msra.mxu0 0
    %2073 = vmatprep.subr.bf16.mxu0 0
    %2074 = vmatpush1.bf16.msra.mxu0 0
    %2075 = vmatprep.subr.bf16.mxu0 0
    %2076 = vmatpush1.bf16.msra.mxu0 0
    %2077 = vmatprep.subr.bf16.mxu0 0
    %2078 = vmatpush1.bf16.msra.mxu0 0
    %2079 = vmatprep.subr.bf16.mxu0 0
    %2080 = vmatpush1.bf16.msra.mxu0 0
    %2081 = vmatprep.subr.bf16.mxu0 0
    %2082 = vmatpush1.bf16.msra.mxu0 0
    %2083 = vmatprep.subr.bf16.mxu0 0
    %2084 = vmatpush1.bf16.msra.mxu0 0
    %2085 = vmatprep.subr.bf16.mxu0 0
    %2086 = vmatpush1.bf16.msra.mxu0 0
    %2087 = vmatprep.subr.bf16.mxu0 0
    %2088 = vmatpush1.bf16.msra.mxu0 0
    %2089 = vmatprep.mubr.bf16.mxu0 0
    %2090 = vmatmul.mubr.bf16.gmra.mrb[0].mxu0 %v2034
    %v2091 = vpop.f32.mrb[0].mxu0
    %v2092 = vadd.f32 %v2024, %v2091
    %v2093 = vpop.f32.mrb[0].mxu0
    %v2094 = vpop.f32.mrb[0].mxu0
    %v2095 = vadd.f32 %v2024, %v2094
    %v2096 = vpop.f32.mrb[0].mxu0
    %2097 = vmatprep.mubr.bf16.mxu0 0
    %2098 = vmatmul.mubr.bf16.gmra.mrb[0].mxu0 %v2037
    %v2099 = vpop.f32.mrb[0].mxu0
    %v2100 = vadd.f32 %v2024, %v2099
    %v2101 = vpop.f32.mrb[0].mxu0
    %v2102 = vpop.f32.mrb[0].mxu0
    %v2103 = vadd.f32 %v2024, %v2102
    %v2104 = vpop.f32.mrb[0].mxu0
    %2105 = vmatprep.mubr.bf16.mxu0 0
    %2106 = vmatmul.mubr.bf16.gmra.mrb[0].mxu0 %v2040
    %v2107 = vpop.f32.mrb[0].mxu0
    %v2108 = vadd.f32 %v2024, %v2107
    %v2109 = vpop.f32.mrb[0].mxu0
    %v2110 = vpop.f32.mrb[0].mxu0
    %v2111 = vadd.f32 %v2024, %v2110
    %v2112 = vpop.f32.mrb[0].mxu0
    %2113 = vmatprep.mubr.bf16.mxu0 0
    %2114 = vmatmul.mubr.bf16.gmra.mrb[0].mxu0 %v2043
    %v2115 = vpop.f32.mrb[0].mxu0
    %v2116 = vadd.f32 %v2024, %v2115
    %v2117 = vpop.f32.mrb[0].mxu0
    %v2118 = vpop.f32.mrb[0].mxu0
    %v2119 = vadd.f32 %v2024, %v2118
    %v2120 = vpop.f32.mrb[0].mxu0
    %2121 = vmatprep.mubr.bf16.mxu0 0
    %2122 = vmatmul.mubr.bf16.gmra.mrb[0].mxu0 %v2046
    %v2123 = vpop.f32.mrb[0].mxu0
    %v2124 = vadd.f32 %v2024, %v2123
    %v2125 = vpop.f32.mrb[0].mxu0
    %v2126 = vpop.f32.mrb[0].mxu0
    %v2127 = vadd.f32 %v2024, %v2126
    %v2128 = vpop.f32.mrb[0].mxu0
    %2129 = vmatprep.mubr.bf16.mxu0 0
    %2130 = vmatmul.mubr.bf16.gmra.mrb[0].mxu0 %v2049
    %v2131 = vpop.f32.mrb[0].mxu0
    %v2132 = vadd.f32 %v2024, %v2131
    %v2133 = vpop.f32.mrb[0].mxu0
    %v2134 = vpop.f32.mrb[0].mxu0
    %v2135 = vadd.f32 %v2024, %v2134
    %v2136 = vpop.f32.mrb[0].mxu0
    %2137 = vmatprep.mubr.bf16.mxu0 0
    %2138 = vmatmul.mubr.bf16.gmra.mrb[0].mxu0 %v2052
    %v2139 = vpop.f32.mrb[0].mxu0
    %v2140 = vadd.f32 %v2024, %v2139
    %v2141 = vpop.f32.mrb[0].mxu0
    %v2142 = vpop.f32.mrb[0].mxu0
    %v2143 = vadd.f32 %v2024, %v2142
    %v2144 = vpop.f32.mrb[0].mxu0
    %2145 = vmatprep.mubr.bf16.mxu0 0
    %2146 = vmatmul.mubr.bf16.gmra.mrb[0].mxu0 %v2055
    %v2147 = vpop.f32.mrb[0].mxu0
    %v2148 = vadd.f32 %v2024, %v2147
    %v2149 = vpop.f32.mrb[0].mxu0
    %v2150 = vpop.f32.mrb[0].mxu0
    %v2151 = vadd.f32 %v2024, %v2150
    %v2152 = vpop.f32.mrb[0].mxu0
    %2153 = vdwg.mxu0
    %2154 = vst [vmem:[#allocation7] sm:$0xff] %v2092
    %2155 = vst [vmem:[#allocation7 + $0x8] sm:$0xff] %v2095
    %2156 = vst [vmem:[#allocation7 + $0x10] sm:$0xff] %v2100
    %2157 = vst [vmem:[#allocation7 + $0x18] sm:$0xff] %v2103
    %2158 = vst [vmem:[#allocation7 + $0x20] sm:$0xff] %v2108
    %2159 = vst [vmem:[#allocation7 + $0x28] sm:$0xff] %v2111
    %2160 = vst [vmem:[#allocation7 + $0x30] sm:$0xff] %v2116
    %2161 = vst [vmem:[#allocation7 + $0x38] sm:$0xff] %v2119
    %2162 = vst [vmem:[#allocation7 + $0x40] sm:$0xff] %v2124
    %2163 = vst [vmem:[#allocation7 + $0x48] sm:$0xff] %v2127
    %2164 = vst [vmem:[#allocation7 + $0x50] sm:$0xff] %v2132
    %2165 = vst [vmem:[#allocation7 + $0x58] sm:$0xff] %v2135
    %2166 = vst [vmem:[#allocation7 + $0x60] sm:$0xff] %v2140
    %2167 = vst [vmem:[#allocation7 + $0x68] sm:$0xff] %v2143
    %2168 = vst [vmem:[#allocation7 + $0x70] sm:$0xff] %v2148
    %2169 = vst [vmem:[#allocation7 + $0x78] sm:$0xff] %v2151
    // Predicated region
    $region34: #{tpu_custom_call.1} parent=1 // pred_check
      _
    $region35: #{tpu_custom_call.1} parent=1 // pred_check_branch
      %2171 = sbr.rel (0) target = $region37
    $region36: #{tpu_custom_call.1} parent=1 // pred_region
      %s2173 = ssub.s32 2048, 2048
      %2174 = vsyncadd [#allocation4], %s2173
      %s2175 = sshll.u32 [#allocation7], 4
      %s2176 = int_to_ptr.vmem [resolvable:$true] %s2175
      %2181 = dma.vmem_to_hbm [thread:$0]  %s2176, 2048, %s6, [#allocation4], 128, 128, 8
    $region37: #{tpu_custom_call.1} parent=1 // pred_fallthru
      _
    // Predicated region
    $region38: #{tpu_custom_call.1} parent=1 // pred_check
      _
    $region39: #{tpu_custom_call.1} parent=1 // pred_check_branch
      %2183 = sbr.rel (0) target = $region41
    $region40: #{tpu_custom_call.1} parent=1 // pred_region
      %2184 = dma.done [#allocation4], 2048
    $region41: #{tpu_custom_call.1} parent=1 // pred_fallthru
      _
    %2185 = vsyncpa [#allocation3], 1
    %2186 = vsyncpa [#allocation6], 1
    %2187 = vsyncpa [#allocation4], 1

</llo_original>
